<compile_context>
chip_gen: v5e
topology: v5e:2x2
jax: 0.10.0
libtpu: 0.0.40
codegen_flags: <defaults>
</compile_context>

<pallas_src>
import jax
import jax.numpy as jnp
from jax.experimental import pallas as pl
from jax.experimental.pallas import tpu as pltpu

EPS = 1e-5


# ------------------------------------------------------------------ fused kernel
def _fused_forward_kernel(x_ref,
                          w1_ref, b1_ref, w2_ref, b2_ref, w3_ref, b3_ref,
                          s1_ref, s2_ref, s3_ref,
                          wf1_ref, bf1_ref, wf2_ref, bf2_ref, wf3_ref, bf3_ref,
                          o_ref):
    f32 = jnp.float32
    c0, bt, _ = x_ref.shape

    # Channel-major sublane stacking of the Bt samples: row = c*bt + b.
    a = jnp.concatenate([x_ref[c] for c in range(c0)], axis=0)      # (c0*bt, L0+2)

    def conv_bn_relu_pool(a, wbd_ref, bbd_ref, sel_ref):
        # a   : (Cin*bt, L+2)  zero columns at 0 and L+1 (the Conv1d padding),
        #                      shared by every row (positions live on lanes).
        # wbd : (Cout*bt, 3*Cin*bt) BN-folded, tap-fused, block-diag over batch slot.
        # bbd : (Cout*bt, 1)        BN-folded bias (repeated per batch slot).
        # sel : (L-1, L//2+2)       0/1 matrix picking even columns of the adjacent-max
        #                           and re-inserting the zero pad columns.
        L = a.shape[1] - 2
        t0 = a[:, 0:L]
        t1 = a[:, 1:L + 1]
        t2 = a[:, 2:L + 2]
        x3 = jnp.concatenate([t0, t1, t2], axis=0)                  # (3*Cin*bt, L)
        y = jnp.dot(wbd_ref[...], x3, preferred_element_type=f32) + bbd_ref[...]
        y = jnp.maximum(y, 0.0)                                     # conv+BN(eval)+ReLU
        # MaxPool1d(2,2): adjacent max (VPU) then ONE selection matmul.
        m = jnp.maximum(y[:, 0:L - 1], y[:, 1:L])                   # m[:,j]=max(y_j,y_{j+1})
        return jnp.dot(m, sel_ref[...], preferred_element_type=f32)  # (Cout*bt, L//2+2)

    a = conv_bn_relu_pool(a, w1_ref, b1_ref, s1_ref)                # (4*bt,  L0/2+2)
    a = conv_bn_relu_pool(a, w2_ref, b2_ref, s2_ref)                # (8*bt,  L0/4+2)
    a = conv_bn_relu_pool(a, w3_ref, b3_ref, s3_ref)                # (16*bt, L0/8+2)

    c3 = a.shape[0] // bt
    l3 = a.shape[1] - 2
    feats = a[:, 1:1 + l3]                                          # (c3*bt, l3)

    # Flatten(1,2) + Linear(512,64): torch feature index f = c*l3 + p, so channel c of
    # every sample (rows c*bt..c*bt+bt-1) contracts against wf1 rows [c*l3,(c+1)*l3).
    # c3 independent (bt, l3) x (l3, 64) matmuls, combined with a balanced tree sum.
    partials = [
        jnp.dot(feats[c * bt:(c + 1) * bt, :],
                wf1_ref[pl.ds(c * l3, l3), :],
                preferred_element_type=f32)
        for c in range(c3)
    ]
    while len(partials) > 1:
        nxt = [partials[i] + partials[i + 1] for i in range(0, len(partials) - 1, 2)]
        if len(partials) % 2:
            nxt.append(partials[-1])
        partials = nxt

    h = jnp.maximum(partials[0] + bf1_ref[...], 0.0)                # (bt, 64)
    h = jnp.maximum(jnp.dot(h, wf2_ref[...], preferred_element_type=f32)
                    + bf2_ref[...], 0.0)                            # (bt, 32)
    out = jnp.dot(h, wf3_ref[...], preferred_element_type=f32) + bf3_ref[...]
    o_ref[...] = out                                                # (bt, 128) lane-dense


# ------------------------------------------------------------------ wrapper
def fused_forward(x, kparams):
    """x: (B, Cin0, L0) float32 -> (B, num_classes)."""
    B, c0, L0 = x.shape

    (w1, b1), (w2, b2), (w3, b3) = kparams["convs"]
    s1, s2, s3 = kparams["sels"]
    (wf1, bf1), (wf2, bf2), (wf3, bf3) = kparams["fcs"]

    bt = w1.shape[1] // (3 * c0)              # batch-block size baked into the weights
    nc = wf3.shape[1]
    ncp = ((nc + 127) // 128) * 128           # lane-dense output width

    b_pad = ((B + bt - 1) // bt) * bt
    xp = jnp.pad(x, ((0, b_pad - B), (0, 0), (1, 1)))   # batch pad + Conv1d zero pad
    xt = jnp.transpose(xp, (1, 0, 2))                   # (c0, b_pad, L0+2)

    wf3p = jnp.pad(wf3, ((0, 0), (0, ncp - nc)))
    bf3p = jnp.pad(bf3, ((0, 0), (0, ncp - nc)))

    args = (xt, w1, b1, w2, b2, w3, b3, s1, s2, s3,
            wf1, bf1, wf2, bf2, wf3p, bf3p)

    def _const_spec(a):
        nd = a.ndim
        return pl.BlockSpec(a.shape, lambda i, _nd=nd: (0,) * _nd)

    in_specs = [pl.BlockSpec((c0, bt, L0 + 2), lambda i: (0, i, 0))]
    in_specs += [_const_spec(a) for a in args[1:]]

    steps = b_pad // bt

    # Advisory cost hint for XLA's scheduler.
    flops_step = 0
    L = L0
    for (wbd, _) in kparams["convs"]:
        m_, k_ = wbd.shape
        flops_step += 2 * m_ * k_ * L                     # fused-tap conv matmul
        flops_step += 2 * m_ * (L - 1) * (L // 2 + 2)     # pooling selection matmul
        L //= 2
    flops_step += 2 * bt * (wf1.size + wf2.size + wf3p.size)
    bytes_accessed = (int(xt.size) + sum(int(a.size) for a in args[1:])
                      + b_pad * ncp) * 4

    out = pl.pallas_call(
        _fused_forward_kernel,
        out_shape=jax.ShapeDtypeStruct((b_pad, ncp), jnp.float32),
        grid=(steps,),
        in_specs=in_specs,
        out_specs=pl.BlockSpec((bt, ncp), lambda i: (i, 0)),
        compiler_params=pltpu.CompilerParams(dimension_semantics=("parallel",)),
        cost_estimate=pl.CostEstimate(flops=int(flops_step * steps), transcendentals=0,
                                      bytes_accessed=int(bytes_accessed)),
    )(*args)
    return out[:B, :nc]


# ------------------------------------------------------------------ parameters
def init_params(key, num_classes, in_channel=(2, 4, 8), out_channel=(4, 8, 16)):
    """PyTorch-like parameters (conv w/b, BN gamma/beta/mean/var, FC w/b)."""
    params = {"convs": [], "fcs": []}
    for ci, co in zip(in_channel, out_channel):
        key, k1, k2, k3, k4, k5, k6 = jax.random.split(key, 7)
        w = 0.2 * jax.random.normal(k1, (co, ci, 3), jnp.float32)      # Conv1d weight
        b = 0.1 * jax.random.normal(k2, (co,), jnp.float32)            # Conv1d bias
        gamma = 1.0 + 0.1 * jax.random.normal(k3, (co,), jnp.float32)  # BN weight
        beta = 0.1 * jax.random.normal(k4, (co,), jnp.float32)         # BN bias
        mean = 0.1 * jax.random.normal(k5, (co,), jnp.float32)         # BN running_mean
        var = 1.0 + 0.1 * jax.random.uniform(k6, (co,), jnp.float32)   # BN running_var
        params["convs"].append((w, b, gamma, beta, mean, var))
    for din, dout in [(512, 64), (64, 32), (32, num_classes)]:
        key, k1, k2 = jax.random.split(key, 3)
        w = jax.random.normal(k1, (din, dout), jnp.float32) / jnp.sqrt(float(din))
        b = 0.05 * jax.random.normal(k2, (1, dout), jnp.float32)
        params["fcs"].append((w, b))
    return params


def prepare_params(params, bt=8, l0=256):
    """Fold BatchNorm (eval) into conv weights, build batch-block-diagonal tap-fused
    conv weights, per-layer pooling selection matrices, and kernel-layout FC params."""
    kp = {"convs": [], "sels": [], "fcs": []}
    eye = jnp.eye(bt, dtype=jnp.float32)
    for (w, b, gamma, beta, mean, var) in params["convs"]:
        cout, cin, _ = w.shape
        scale = gamma * jax.lax.rsqrt(var + EPS)                  # (Cout,)
        w_f = w * scale[:, None, None]                            # (Cout, Cin, 3)
        b_f = (b - mean) * scale + beta                           # (Cout,)
        wt = jnp.transpose(w_f, (2, 0, 1))                        # (3, Cout, Cin)
        big = jnp.einsum('koc,bd->obkcd', wt, eye)                # (Cout,bt,3,Cin,bt)
        wbd = big.reshape(cout * bt, 3 * cin * bt)                # block-diag over batch
        bbd = jnp.repeat(b_f, bt)[:, None]                        # (Cout*bt, 1)
        kp["convs"].append((wbd, bbd))
    L = l0
    for _ in params["convs"]:
        r = jnp.arange(L - 1)[:, None]
        c = jnp.arange(L // 2 + 2)[None, :]
        kp["sels"].append((r == 2 * c - 2).astype(jnp.float32))   # (L-1, L//2+2)
        L //= 2
    kp["fcs"] = [(w, b.reshape(1, -1)) for (w, b) in params["fcs"]]
    return kp


# ------------------------------------------------------------------ exact f32 reference
def reference_forward(x, params):
    """Pure-JAX reference mirroring the PyTorch module (BN in eval mode)."""
    for (w, b, gamma, beta, mean, var) in params["convs"]:
        B, cin, L = x.shape
        cout = w.shape[0]
        xp = jnp.pad(x, ((0, 0), (0, 0), (1, 1)))
        acc = jnp.zeros((B, cout, L), jnp.float32)
        for ci in range(cin):
            for k in range(3):
                acc = acc + w[None, :, ci, k, None] * xp[:, ci, k:k + L][:, None, :]
        y = acc + b[None, :, None]
        scale = gamma / jnp.sqrt(var + EPS)
        y = (y - mean[None, :, None]) * scale[None, :, None] + beta[None, :, None]
        y = jnp.maximum(y, 0.0)
        x = jnp.maximum(y[:, :, 0::2], y[:, :, 1::2])             # MaxPool1d(2, 2)
    xf = x.reshape(x.shape[0], -1)                                # Flatten(1, 2)
    n_fc = len(params["fcs"])
    for i, (w, b) in enumerate(params["fcs"]):
        xf = jnp.sum(xf[:, :, None] * w[None, :, :], axis=1) + b
        if i < n_fc - 1:
            xf = jnp.maximum(xf, 0.0)
    return xf


# ------------------------------------------------------------------ main
if __name__ == "__main__":
    key = jax.random.PRNGKey(0)
    kx, kp = jax.random.split(key)

    num_classes = 10
    # L = 256 so that after 3x MaxPool(2) the flatten yields 16 * 32 = 512 features,
    # matching Linear(512, 64) in the reference module.  B=16 with Bt=8 -> grid=(2,).
    B, Cin, L = 16, 2, 256
    x = jax.random.normal(kx, (B, Cin, L), jnp.float32)
    params = init_params(kp, num_classes)
    kparams = prepare_params(params, bt=8, l0=L)

    fwd = jax.jit(fused_forward)
    out = jax.block_until_ready(fwd(x, kparams))

    assert out.shape == (B, num_classes), out.shape
    assert bool(jnp.all(jnp.isfinite(out)))

    ref = reference_forward(x, params)
    max_err = float(jnp.max(jnp.abs(out - ref)))
    assert bool(jnp.allclose(out, ref, rtol=5e-2, atol=5e-2)), max_err

    print("KERNEL_OK")
</pallas_src>

<mosaic_0001>
module attributes {stable_mosaic.version = 11 : i64} {
  func.func @_fused_forward_kernel(%arg0: i32, %arg1: memref<2x8x258xf32, #tpu.memory_space<vmem>>, %arg2: memref<32x48xf32, #tpu.memory_space<vmem>>, %arg3: memref<32x1xf32, #tpu.memory_space<vmem>>, %arg4: memref<64x96xf32, #tpu.memory_space<vmem>>, %arg5: memref<64x1xf32, #tpu.memory_space<vmem>>, %arg6: memref<128x192xf32, #tpu.memory_space<vmem>>, %arg7: memref<128x1xf32, #tpu.memory_space<vmem>>, %arg8: memref<255x130xf32, #tpu.memory_space<vmem>>, %arg9: memref<127x66xf32, #tpu.memory_space<vmem>>, %arg10: memref<63x34xf32, #tpu.memory_space<vmem>>, %arg11: memref<512x64xf32, #tpu.memory_space<vmem>>, %arg12: memref<1x64xf32, #tpu.memory_space<vmem>>, %arg13: memref<64x32xf32, #tpu.memory_space<vmem>>, %arg14: memref<1x32xf32, #tpu.memory_space<vmem>>, %arg15: memref<32x128xf32, #tpu.memory_space<vmem>>, %arg16: memref<1x128xf32, #tpu.memory_space<vmem>>, %arg17: memref<8x128xf32, #tpu.memory_space<vmem>>) attributes {dimension_semantics = [#tpu.dimension_semantics<parallel>], iteration_bounds = array<i64: 2>, scalar_prefetch = 0 : i64, scratch_operands = 0 : i64, tpu.core_type = #tpu.core_type<tc>, window_params = [{transform_indices = @transform_0, window_bounds = array<i64: 2, 8, 258>}, {pipeline_mode = #tpu.pipeline_mode<synchronous>, transform_indices = @transform_1, window_bounds = array<i64: 32, 48>}, {pipeline_mode = #tpu.pipeline_mode<synchronous>, transform_indices = @transform_2, window_bounds = array<i64: 32, 1>}, {pipeline_mode = #tpu.pipeline_mode<synchronous>, transform_indices = @transform_3, window_bounds = array<i64: 64, 96>}, {pipeline_mode = #tpu.pipeline_mode<synchronous>, transform_indices = @transform_4, window_bounds = array<i64: 64, 1>}, {pipeline_mode = #tpu.pipeline_mode<synchronous>, transform_indices = @transform_5, window_bounds = array<i64: 128, 192>}, {pipeline_mode = #tpu.pipeline_mode<synchronous>, transform_indices = @transform_6, window_bounds = array<i64: 128, 1>}, {pipeline_mode = #tpu.pipeline_mode<synchronous>, transform_indices = @transform_7, window_bounds = array<i64: 255, 130>}, {pipeline_mode = #tpu.pipeline_mode<synchronous>, transform_indices = @transform_8, window_bounds = array<i64: 127, 66>}, {pipeline_mode = #tpu.pipeline_mode<synchronous>, transform_indices = @transform_9, window_bounds = array<i64: 63, 34>}, {pipeline_mode = #tpu.pipeline_mode<synchronous>, transform_indices = @transform_10, window_bounds = array<i64: 512, 64>}, {pipeline_mode = #tpu.pipeline_mode<synchronous>, transform_indices = @transform_11, window_bounds = array<i64: 1, 64>}, {pipeline_mode = #tpu.pipeline_mode<synchronous>, transform_indices = @transform_12, window_bounds = array<i64: 64, 32>}, {pipeline_mode = #tpu.pipeline_mode<synchronous>, transform_indices = @transform_13, window_bounds = array<i64: 1, 32>}, {pipeline_mode = #tpu.pipeline_mode<synchronous>, transform_indices = @transform_14, window_bounds = array<i64: 32, 128>}, {pipeline_mode = #tpu.pipeline_mode<synchronous>, transform_indices = @transform_15, window_bounds = array<i64: 1, 128>}, {transform_indices = @transform_16, window_bounds = array<i64: 8, 128>}]} {
    %c0 = arith.constant 0 : index
    %c0_0 = arith.constant 0 : index
    %c0_1 = arith.constant 0 : index
    %0 = vector.load %arg1[%c0, %c0_0, %c0_1] : memref<2x8x258xf32, #tpu.memory_space<vmem>>, vector<1x8x258xf32>
    %1 = vector.shape_cast %0 : vector<1x8x258xf32> to vector<8x258xf32>
    %c1 = arith.constant 1 : index
    %c0_2 = arith.constant 0 : index
    %c0_3 = arith.constant 0 : index
    %2 = vector.load %arg1[%c1, %c0_2, %c0_3] : memref<2x8x258xf32, #tpu.memory_space<vmem>>, vector<1x8x258xf32>
    %3 = vector.shape_cast %2 : vector<1x8x258xf32> to vector<8x258xf32>
    %4 = tpu.concatenate %1, %3 in 0 : vector<8x258xf32>, vector<8x258xf32> -> vector<16x258xf32>
    %5 = vector.extract_strided_slice %4 {offsets = [0, 0], sizes = [16, 256], strides = [1, 1]} : vector<16x258xf32> to vector<16x256xf32>
    %6 = vector.extract_strided_slice %4 {offsets = [0, 1], sizes = [16, 256], strides = [1, 1]} : vector<16x258xf32> to vector<16x256xf32>
    %7 = vector.extract_strided_slice %4 {offsets = [0, 2], sizes = [16, 256], strides = [1, 1]} : vector<16x258xf32> to vector<16x256xf32>
    %8 = tpu.concatenate %5, %6, %7 in 0 : vector<16x256xf32>, vector<16x256xf32>, vector<16x256xf32> -> vector<48x256xf32>
    %c0_4 = arith.constant 0 : index
    %c0_5 = arith.constant 0 : index
    %9 = vector.load %arg2[%c0_4, %c0_5] : memref<32x48xf32, #tpu.memory_space<vmem>>, vector<32x48xf32>
    %cst = arith.constant dense<0.000000e+00> : vector<32x256xf32>
    %10 = tpu.matmul %9, %8, %cst {dimension_numbers = #tpu.dot_dimension_numbers<[1], [0], [0], [1], [0, 0, 1, 1], [], []>} : vector<32x48xf32>, vector<48x256xf32>, vector<32x256xf32> -> vector<32x256xf32>
    %c0_6 = arith.constant 0 : index
    %c0_7 = arith.constant 0 : index
    %11 = vector.load %arg3[%c0_6, %c0_7] : memref<32x1xf32, #tpu.memory_space<vmem>>, vector<32x1xf32>
    %12 = vector.broadcast %11 : vector<32x1xf32> to vector<32x256xf32>
    %13 = arith.addf %10, %12 : vector<32x256xf32>
    %cst_8 = arith.constant 0.000000e+00 : f32
    %14 = vector.broadcast %cst_8 : f32 to vector<32x256xf32>
    %15 = arith.maximumf %13, %14 : vector<32x256xf32>
    %16 = vector.extract_strided_slice %15 {offsets = [0, 0], sizes = [32, 255], strides = [1, 1]} : vector<32x256xf32> to vector<32x255xf32>
    %17 = vector.extract_strided_slice %15 {offsets = [0, 1], sizes = [32, 255], strides = [1, 1]} : vector<32x256xf32> to vector<32x255xf32>
    %18 = arith.maximumf %16, %17 : vector<32x255xf32>
    %c0_9 = arith.constant 0 : index
    %c0_10 = arith.constant 0 : index
    %19 = vector.load %arg8[%c0_9, %c0_10] : memref<255x130xf32, #tpu.memory_space<vmem>>, vector<255x130xf32>
    %cst_11 = arith.constant dense<0.000000e+00> : vector<32x130xf32>
    %20 = tpu.matmul %18, %19, %cst_11 {dimension_numbers = #tpu.dot_dimension_numbers<[1], [0], [0], [1], [0, 0, 1, 1], [], []>} : vector<32x255xf32>, vector<255x130xf32>, vector<32x130xf32> -> vector<32x130xf32>
    %21 = vector.extract_strided_slice %20 {offsets = [0, 0], sizes = [32, 128], strides = [1, 1]} : vector<32x130xf32> to vector<32x128xf32>
    %22 = vector.extract_strided_slice %20 {offsets = [0, 1], sizes = [32, 128], strides = [1, 1]} : vector<32x130xf32> to vector<32x128xf32>
    %23 = vector.extract_strided_slice %20 {offsets = [0, 2], sizes = [32, 128], strides = [1, 1]} : vector<32x130xf32> to vector<32x128xf32>
    %24 = tpu.concatenate %21, %22, %23 in 0 : vector<32x128xf32>, vector<32x128xf32>, vector<32x128xf32> -> vector<96x128xf32>
    %c0_12 = arith.constant 0 : index
    %c0_13 = arith.constant 0 : index
    %25 = vector.load %arg4[%c0_12, %c0_13] : memref<64x96xf32, #tpu.memory_space<vmem>>, vector<64x96xf32>
    %cst_14 = arith.constant dense<0.000000e+00> : vector<64x128xf32>
    %26 = tpu.matmul %25, %24, %cst_14 {dimension_numbers = #tpu.dot_dimension_numbers<[1], [0], [0], [1], [0, 0, 1, 1], [], []>} : vector<64x96xf32>, vector<96x128xf32>, vector<64x128xf32> -> vector<64x128xf32>
    %c0_15 = arith.constant 0 : index
    %c0_16 = arith.constant 0 : index
    %27 = vector.load %arg5[%c0_15, %c0_16] : memref<64x1xf32, #tpu.memory_space<vmem>>, vector<64x1xf32>
    %28 = vector.broadcast %27 : vector<64x1xf32> to vector<64x128xf32>
    %29 = arith.addf %26, %28 : vector<64x128xf32>
    %cst_17 = arith.constant 0.000000e+00 : f32
    %30 = vector.broadcast %cst_17 : f32 to vector<64x128xf32>
    %31 = arith.maximumf %29, %30 : vector<64x128xf32>
    %32 = vector.extract_strided_slice %31 {offsets = [0, 0], sizes = [64, 127], strides = [1, 1]} : vector<64x128xf32> to vector<64x127xf32>
    %33 = vector.extract_strided_slice %31 {offsets = [0, 1], sizes = [64, 127], strides = [1, 1]} : vector<64x128xf32> to vector<64x127xf32>
    %34 = arith.maximumf %32, %33 : vector<64x127xf32>
    %c0_18 = arith.constant 0 : index
    %c0_19 = arith.constant 0 : index
    %35 = vector.load %arg9[%c0_18, %c0_19] : memref<127x66xf32, #tpu.memory_space<vmem>>, vector<127x66xf32>
    %cst_20 = arith.constant dense<0.000000e+00> : vector<64x66xf32>
    %36 = tpu.matmul %34, %35, %cst_20 {dimension_numbers = #tpu.dot_dimension_numbers<[1], [0], [0], [1], [0, 0, 1, 1], [], []>} : vector<64x127xf32>, vector<127x66xf32>, vector<64x66xf32> -> vector<64x66xf32>
    %37 = vector.extract_strided_slice %36 {offsets = [0, 0], sizes = [64, 64], strides = [1, 1]} : vector<64x66xf32> to vector<64x64xf32>
    %38 = vector.extract_strided_slice %36 {offsets = [0, 1], sizes = [64, 64], strides = [1, 1]} : vector<64x66xf32> to vector<64x64xf32>
    %39 = vector.extract_strided_slice %36 {offsets = [0, 2], sizes = [64, 64], strides = [1, 1]} : vector<64x66xf32> to vector<64x64xf32>
    %40 = tpu.concatenate %37, %38, %39 in 0 : vector<64x64xf32>, vector<64x64xf32>, vector<64x64xf32> -> vector<192x64xf32>
    %c0_21 = arith.constant 0 : index
    %c0_22 = arith.constant 0 : index
    %41 = vector.load %arg6[%c0_21, %c0_22] : memref<128x192xf32, #tpu.memory_space<vmem>>, vector<128x192xf32>
    %cst_23 = arith.constant dense<0.000000e+00> : vector<128x64xf32>
    %42 = tpu.matmul %41, %40, %cst_23 {dimension_numbers = #tpu.dot_dimension_numbers<[1], [0], [0], [1], [0, 0, 1, 1], [], []>} : vector<128x192xf32>, vector<192x64xf32>, vector<128x64xf32> -> vector<128x64xf32>
    %c0_24 = arith.constant 0 : index
    %c0_25 = arith.constant 0 : index
    %43 = vector.load %arg7[%c0_24, %c0_25] : memref<128x1xf32, #tpu.memory_space<vmem>>, vector<128x1xf32>
    %44 = vector.broadcast %43 : vector<128x1xf32> to vector<128x64xf32>
    %45 = arith.addf %42, %44 : vector<128x64xf32>
    %cst_26 = arith.constant 0.000000e+00 : f32
    %46 = vector.broadcast %cst_26 : f32 to vector<128x64xf32>
    %47 = arith.maximumf %45, %46 : vector<128x64xf32>
    %48 = vector.extract_strided_slice %47 {offsets = [0, 0], sizes = [128, 63], strides = [1, 1]} : vector<128x64xf32> to vector<128x63xf32>
    %49 = vector.extract_strided_slice %47 {offsets = [0, 1], sizes = [128, 63], strides = [1, 1]} : vector<128x64xf32> to vector<128x63xf32>
    %50 = arith.maximumf %48, %49 : vector<128x63xf32>
    %c0_27 = arith.constant 0 : index
    %c0_28 = arith.constant 0 : index
    %51 = vector.load %arg10[%c0_27, %c0_28] : memref<63x34xf32, #tpu.memory_space<vmem>>, vector<63x34xf32>
    %cst_29 = arith.constant dense<0.000000e+00> : vector<128x34xf32>
    %52 = tpu.matmul %50, %51, %cst_29 {dimension_numbers = #tpu.dot_dimension_numbers<[1], [0], [0], [1], [0, 0, 1, 1], [], []>} : vector<128x63xf32>, vector<63x34xf32>, vector<128x34xf32> -> vector<128x34xf32>
    %53 = vector.extract_strided_slice %52 {offsets = [0, 1], sizes = [128, 32], strides = [1, 1]} : vector<128x34xf32> to vector<128x32xf32>
    %54 = vector.extract_strided_slice %53 {offsets = [0, 0], sizes = [8, 32], strides = [1, 1]} : vector<128x32xf32> to vector<8x32xf32>
    %c0_30 = arith.constant 0 : index
    %c0_31 = arith.constant 0 : index
    %55 = vector.load %arg11[%c0_30, %c0_31] : memref<512x64xf32, #tpu.memory_space<vmem>>, vector<32x64xf32>
    %cst_32 = arith.constant dense<0.000000e+00> : vector<8x64xf32>
    %56 = tpu.matmul %54, %55, %cst_32 {dimension_numbers = #tpu.dot_dimension_numbers<[1], [0], [0], [1], [0, 0, 1, 1], [], []>} : vector<8x32xf32>, vector<32x64xf32>, vector<8x64xf32> -> vector<8x64xf32>
    %57 = vector.extract_strided_slice %53 {offsets = [8, 0], sizes = [8, 32], strides = [1, 1]} : vector<128x32xf32> to vector<8x32xf32>
    %c32 = arith.constant 32 : index
    %c0_33 = arith.constant 0 : index
    %58 = vector.load %arg11[%c32, %c0_33] : memref<512x64xf32, #tpu.memory_space<vmem>>, vector<32x64xf32>
    %cst_34 = arith.constant dense<0.000000e+00> : vector<8x64xf32>
    %59 = tpu.matmul %57, %58, %cst_34 {dimension_numbers = #tpu.dot_dimension_numbers<[1], [0], [0], [1], [0, 0, 1, 1], [], []>} : vector<8x32xf32>, vector<32x64xf32>, vector<8x64xf32> -> vector<8x64xf32>
    %60 = vector.extract_strided_slice %53 {offsets = [16, 0], sizes = [8, 32], strides = [1, 1]} : vector<128x32xf32> to vector<8x32xf32>
    %c64 = arith.constant 64 : index
    %c0_35 = arith.constant 0 : index
    %61 = vector.load %arg11[%c64, %c0_35] : memref<512x64xf32, #tpu.memory_space<vmem>>, vector<32x64xf32>
    %cst_36 = arith.constant dense<0.000000e+00> : vector<8x64xf32>
    %62 = tpu.matmul %60, %61, %cst_36 {dimension_numbers = #tpu.dot_dimension_numbers<[1], [0], [0], [1], [0, 0, 1, 1], [], []>} : vector<8x32xf32>, vector<32x64xf32>, vector<8x64xf32> -> vector<8x64xf32>
    %63 = vector.extract_strided_slice %53 {offsets = [24, 0], sizes = [8, 32], strides = [1, 1]} : vector<128x32xf32> to vector<8x32xf32>
    %c96 = arith.constant 96 : index
    %c0_37 = arith.constant 0 : index
    %64 = vector.load %arg11[%c96, %c0_37] : memref<512x64xf32, #tpu.memory_space<vmem>>, vector<32x64xf32>
    %cst_38 = arith.constant dense<0.000000e+00> : vector<8x64xf32>
    %65 = tpu.matmul %63, %64, %cst_38 {dimension_numbers = #tpu.dot_dimension_numbers<[1], [0], [0], [1], [0, 0, 1, 1], [], []>} : vector<8x32xf32>, vector<32x64xf32>, vector<8x64xf32> -> vector<8x64xf32>
    %66 = vector.extract_strided_slice %53 {offsets = [32, 0], sizes = [8, 32], strides = [1, 1]} : vector<128x32xf32> to vector<8x32xf32>
    %c128 = arith.constant 128 : index
    %c0_39 = arith.constant 0 : index
    %67 = vector.load %arg11[%c128, %c0_39] : memref<512x64xf32, #tpu.memory_space<vmem>>, vector<32x64xf32>
    %cst_40 = arith.constant dense<0.000000e+00> : vector<8x64xf32>
    %68 = tpu.matmul %66, %67, %cst_40 {dimension_numbers = #tpu.dot_dimension_numbers<[1], [0], [0], [1], [0, 0, 1, 1], [], []>} : vector<8x32xf32>, vector<32x64xf32>, vector<8x64xf32> -> vector<8x64xf32>
    %69 = vector.extract_strided_slice %53 {offsets = [40, 0], sizes = [8, 32], strides = [1, 1]} : vector<128x32xf32> to vector<8x32xf32>
    %c160 = arith.constant 160 : index
    %c0_41 = arith.constant 0 : index
    %70 = vector.load %arg11[%c160, %c0_41] : memref<512x64xf32, #tpu.memory_space<vmem>>, vector<32x64xf32>
    %cst_42 = arith.constant dense<0.000000e+00> : vector<8x64xf32>
    %71 = tpu.matmul %69, %70, %cst_42 {dimension_numbers = #tpu.dot_dimension_numbers<[1], [0], [0], [1], [0, 0, 1, 1], [], []>} : vector<8x32xf32>, vector<32x64xf32>, vector<8x64xf32> -> vector<8x64xf32>
    %72 = vector.extract_strided_slice %53 {offsets = [48, 0], sizes = [8, 32], strides = [1, 1]} : vector<128x32xf32> to vector<8x32xf32>
    %c192 = arith.constant 192 : index
    %c0_43 = arith.constant 0 : index
    %73 = vector.load %arg11[%c192, %c0_43] : memref<512x64xf32, #tpu.memory_space<vmem>>, vector<32x64xf32>
    %cst_44 = arith.constant dense<0.000000e+00> : vector<8x64xf32>
    %74 = tpu.matmul %72, %73, %cst_44 {dimension_numbers = #tpu.dot_dimension_numbers<[1], [0], [0], [1], [0, 0, 1, 1], [], []>} : vector<8x32xf32>, vector<32x64xf32>, vector<8x64xf32> -> vector<8x64xf32>
    %75 = vector.extract_strided_slice %53 {offsets = [56, 0], sizes = [8, 32], strides = [1, 1]} : vector<128x32xf32> to vector<8x32xf32>
    %c224 = arith.constant 224 : index
    %c0_45 = arith.constant 0 : index
    %76 = vector.load %arg11[%c224, %c0_45] : memref<512x64xf32, #tpu.memory_space<vmem>>, vector<32x64xf32>
    %cst_46 = arith.constant dense<0.000000e+00> : vector<8x64xf32>
    %77 = tpu.matmul %75, %76, %cst_46 {dimension_numbers = #tpu.dot_dimension_numbers<[1], [0], [0], [1], [0, 0, 1, 1], [], []>} : vector<8x32xf32>, vector<32x64xf32>, vector<8x64xf32> -> vector<8x64xf32>
    %78 = vector.extract_strided_slice %53 {offsets = [64, 0], sizes = [8, 32], strides = [1, 1]} : vector<128x32xf32> to vector<8x32xf32>
    %c256 = arith.constant 256 : index
    %c0_47 = arith.constant 0 : index
    %79 = vector.load %arg11[%c256, %c0_47] : memref<512x64xf32, #tpu.memory_space<vmem>>, vector<32x64xf32>
    %cst_48 = arith.constant dense<0.000000e+00> : vector<8x64xf32>
    %80 = tpu.matmul %78, %79, %cst_48 {dimension_numbers = #tpu.dot_dimension_numbers<[1], [0], [0], [1], [0, 0, 1, 1], [], []>} : vector<8x32xf32>, vector<32x64xf32>, vector<8x64xf32> -> vector<8x64xf32>
    %81 = vector.extract_strided_slice %53 {offsets = [72, 0], sizes = [8, 32], strides = [1, 1]} : vector<128x32xf32> to vector<8x32xf32>
    %c288 = arith.constant 288 : index
    %c0_49 = arith.constant 0 : index
    %82 = vector.load %arg11[%c288, %c0_49] : memref<512x64xf32, #tpu.memory_space<vmem>>, vector<32x64xf32>
    %cst_50 = arith.constant dense<0.000000e+00> : vector<8x64xf32>
    %83 = tpu.matmul %81, %82, %cst_50 {dimension_numbers = #tpu.dot_dimension_numbers<[1], [0], [0], [1], [0, 0, 1, 1], [], []>} : vector<8x32xf32>, vector<32x64xf32>, vector<8x64xf32> -> vector<8x64xf32>
    %84 = vector.extract_strided_slice %53 {offsets = [80, 0], sizes = [8, 32], strides = [1, 1]} : vector<128x32xf32> to vector<8x32xf32>
    %c320 = arith.constant 320 : index
    %c0_51 = arith.constant 0 : index
    %85 = vector.load %arg11[%c320, %c0_51] : memref<512x64xf32, #tpu.memory_space<vmem>>, vector<32x64xf32>
    %cst_52 = arith.constant dense<0.000000e+00> : vector<8x64xf32>
    %86 = tpu.matmul %84, %85, %cst_52 {dimension_numbers = #tpu.dot_dimension_numbers<[1], [0], [0], [1], [0, 0, 1, 1], [], []>} : vector<8x32xf32>, vector<32x64xf32>, vector<8x64xf32> -> vector<8x64xf32>
    %87 = vector.extract_strided_slice %53 {offsets = [88, 0], sizes = [8, 32], strides = [1, 1]} : vector<128x32xf32> to vector<8x32xf32>
    %c352 = arith.constant 352 : index
    %c0_53 = arith.constant 0 : index
    %88 = vector.load %arg11[%c352, %c0_53] : memref<512x64xf32, #tpu.memory_space<vmem>>, vector<32x64xf32>
    %cst_54 = arith.constant dense<0.000000e+00> : vector<8x64xf32>
    %89 = tpu.matmul %87, %88, %cst_54 {dimension_numbers = #tpu.dot_dimension_numbers<[1], [0], [0], [1], [0, 0, 1, 1], [], []>} : vector<8x32xf32>, vector<32x64xf32>, vector<8x64xf32> -> vector<8x64xf32>
    %90 = vector.extract_strided_slice %53 {offsets = [96, 0], sizes = [8, 32], strides = [1, 1]} : vector<128x32xf32> to vector<8x32xf32>
    %c384 = arith.constant 384 : index
    %c0_55 = arith.constant 0 : index
    %91 = vector.load %arg11[%c384, %c0_55] : memref<512x64xf32, #tpu.memory_space<vmem>>, vector<32x64xf32>
    %cst_56 = arith.constant dense<0.000000e+00> : vector<8x64xf32>
    %92 = tpu.matmul %90, %91, %cst_56 {dimension_numbers = #tpu.dot_dimension_numbers<[1], [0], [0], [1], [0, 0, 1, 1], [], []>} : vector<8x32xf32>, vector<32x64xf32>, vector<8x64xf32> -> vector<8x64xf32>
    %93 = vector.extract_strided_slice %53 {offsets = [104, 0], sizes = [8, 32], strides = [1, 1]} : vector<128x32xf32> to vector<8x32xf32>
    %c416 = arith.constant 416 : index
    %c0_57 = arith.constant 0 : index
    %94 = vector.load %arg11[%c416, %c0_57] : memref<512x64xf32, #tpu.memory_space<vmem>>, vector<32x64xf32>
    %cst_58 = arith.constant dense<0.000000e+00> : vector<8x64xf32>
    %95 = tpu.matmul %93, %94, %cst_58 {dimension_numbers = #tpu.dot_dimension_numbers<[1], [0], [0], [1], [0, 0, 1, 1], [], []>} : vector<8x32xf32>, vector<32x64xf32>, vector<8x64xf32> -> vector<8x64xf32>
    %96 = vector.extract_strided_slice %53 {offsets = [112, 0], sizes = [8, 32], strides = [1, 1]} : vector<128x32xf32> to vector<8x32xf32>
    %c448 = arith.constant 448 : index
    %c0_59 = arith.constant 0 : index
    %97 = vector.load %arg11[%c448, %c0_59] : memref<512x64xf32, #tpu.memory_space<vmem>>, vector<32x64xf32>
    %cst_60 = arith.constant dense<0.000000e+00> : vector<8x64xf32>
    %98 = tpu.matmul %96, %97, %cst_60 {dimension_numbers = #tpu.dot_dimension_numbers<[1], [0], [0], [1], [0, 0, 1, 1], [], []>} : vector<8x32xf32>, vector<32x64xf32>, vector<8x64xf32> -> vector<8x64xf32>
    %99 = vector.extract_strided_slice %53 {offsets = [120, 0], sizes = [8, 32], strides = [1, 1]} : vector<128x32xf32> to vector<8x32xf32>
    %c480 = arith.constant 480 : index
    %c0_61 = arith.constant 0 : index
    %100 = vector.load %arg11[%c480, %c0_61] : memref<512x64xf32, #tpu.memory_space<vmem>>, vector<32x64xf32>
    %cst_62 = arith.constant dense<0.000000e+00> : vector<8x64xf32>
    %101 = tpu.matmul %99, %100, %cst_62 {dimension_numbers = #tpu.dot_dimension_numbers<[1], [0], [0], [1], [0, 0, 1, 1], [], []>} : vector<8x32xf32>, vector<32x64xf32>, vector<8x64xf32> -> vector<8x64xf32>
    %102 = arith.addf %56, %59 : vector<8x64xf32>
    %103 = arith.addf %62, %65 : vector<8x64xf32>
    %104 = arith.addf %68, %71 : vector<8x64xf32>
    %105 = arith.addf %74, %77 : vector<8x64xf32>
    %106 = arith.addf %80, %83 : vector<8x64xf32>
    %107 = arith.addf %86, %89 : vector<8x64xf32>
    %108 = arith.addf %92, %95 : vector<8x64xf32>
    %109 = arith.addf %98, %101 : vector<8x64xf32>
    %110 = arith.addf %102, %103 : vector<8x64xf32>
    %111 = arith.addf %104, %105 : vector<8x64xf32>
    %112 = arith.addf %106, %107 : vector<8x64xf32>
    %113 = arith.addf %108, %109 : vector<8x64xf32>
    %114 = arith.addf %110, %111 : vector<8x64xf32>
    %115 = arith.addf %112, %113 : vector<8x64xf32>
    %116 = arith.addf %114, %115 : vector<8x64xf32>
    %c0_63 = arith.constant 0 : index
    %c0_64 = arith.constant 0 : index
    %117 = vector.load %arg12[%c0_63, %c0_64] : memref<1x64xf32, #tpu.memory_space<vmem>>, vector<1x64xf32>
    %118 = vector.broadcast %117 : vector<1x64xf32> to vector<8x64xf32>
    %119 = arith.addf %116, %118 : vector<8x64xf32>
    %cst_65 = arith.constant 0.000000e+00 : f32
    %120 = vector.broadcast %cst_65 : f32 to vector<8x64xf32>
    %121 = arith.maximumf %119, %120 : vector<8x64xf32>
    %c0_66 = arith.constant 0 : index
    %c0_67 = arith.constant 0 : index
    %122 = vector.load %arg13[%c0_66, %c0_67] : memref<64x32xf32, #tpu.memory_space<vmem>>, vector<64x32xf32>
    %cst_68 = arith.constant dense<0.000000e+00> : vector<8x32xf32>
    %123 = tpu.matmul %121, %122, %cst_68 {dimension_numbers = #tpu.dot_dimension_numbers<[1], [0], [0], [1], [0, 0, 1, 1], [], []>} : vector<8x64xf32>, vector<64x32xf32>, vector<8x32xf32> -> vector<8x32xf32>
    %c0_69 = arith.constant 0 : index
    %c0_70 = arith.constant 0 : index
    %124 = vector.load %arg14[%c0_69, %c0_70] : memref<1x32xf32, #tpu.memory_space<vmem>>, vector<1x32xf32>
    %125 = vector.broadcast %124 : vector<1x32xf32> to vector<8x32xf32>
    %126 = arith.addf %123, %125 : vector<8x32xf32>
    %cst_71 = arith.constant 0.000000e+00 : f32
    %127 = vector.broadcast %cst_71 : f32 to vector<8x32xf32>
    %128 = arith.maximumf %126, %127 : vector<8x32xf32>
    %c0_72 = arith.constant 0 : index
    %c0_73 = arith.constant 0 : index
    %129 = vector.load %arg15[%c0_72, %c0_73] : memref<32x128xf32, #tpu.memory_space<vmem>>, vector<32x128xf32>
    %cst_74 = arith.constant dense<0.000000e+00> : vector<8x128xf32>
    %130 = tpu.matmul %128, %129, %cst_74 {dimension_numbers = #tpu.dot_dimension_numbers<[1], [0], [0], [1], [0, 0, 1, 1], [], []>} : vector<8x32xf32>, vector<32x128xf32>, vector<8x128xf32> -> vector<8x128xf32>
    %c0_75 = arith.constant 0 : index
    %c0_76 = arith.constant 0 : index
    %131 = vector.load %arg16[%c0_75, %c0_76] : memref<1x128xf32, #tpu.memory_space<vmem>>, vector<1x128xf32>
    %132 = vector.broadcast %131 : vector<1x128xf32> to vector<8x128xf32>
    %133 = arith.addf %130, %132 : vector<8x128xf32>
    %c0_77 = arith.constant 0 : index
    %c0_78 = arith.constant 0 : index
    %134 = vector.load %arg17[%c0_77, %c0_78] : memref<8x128xf32, #tpu.memory_space<vmem>>, vector<8x128xf32>
    tpu.vector_store %arg17[%c0_77, %c0_78], %133 {strides = array<i32>} : memref<8x128xf32, #tpu.memory_space<vmem>>, vector<8x128xf32>,
    return
  }
  func.func @transform_0(%arg0: i32) -> (i32, i32, i32) {
    %c0_i32 = arith.constant 0 : i32
    %c0_i32_0 = arith.constant 0 : i32
    %c0_i32_1 = arith.constant 0 : i32
    return %c0_i32, %arg0, %c0_i32_0 : i32, i32, i32
  }
  func.func @transform_1(%arg0: i32) -> (i32, i32) {
    %c0_i32 = arith.constant 0 : i32
    %c0_i32_0 = arith.constant 0 : i32
    %c0_i32_1 = arith.constant 0 : i32
    return %c0_i32, %c0_i32_0 : i32, i32
  }
  func.func @transform_2(%arg0: i32) -> (i32, i32) {
    %c0_i32 = arith.constant 0 : i32
    %c0_i32_0 = arith.constant 0 : i32
    %c0_i32_1 = arith.constant 0 : i32
    return %c0_i32, %c0_i32_0 : i32, i32
  }
  func.func @transform_3(%arg0: i32) -> (i32, i32) {
    %c0_i32 = arith.constant 0 : i32
    %c0_i32_0 = arith.constant 0 : i32
    %c0_i32_1 = arith.constant 0 : i32
    return %c0_i32, %c0_i32_0 : i32, i32
  }
  func.func @transform_4(%arg0: i32) -> (i32, i32) {
    %c0_i32 = arith.constant 0 : i32
    %c0_i32_0 = arith.constant 0 : i32
    %c0_i32_1 = arith.constant 0 : i32
    return %c0_i32, %c0_i32_0 : i32, i32
  }
  func.func @transform_5(%arg0: i32) -> (i32, i32) {
    %c0_i32 = arith.constant 0 : i32
    %c0_i32_0 = arith.constant 0 : i32
    %c0_i32_1 = arith.constant 0 : i32
    return %c0_i32, %c0_i32_0 : i32, i32
  }
  func.func @transform_6(%arg0: i32) -> (i32, i32) {
    %c0_i32 = arith.constant 0 : i32
    %c0_i32_0 = arith.constant 0 : i32
    %c0_i32_1 = arith.constant 0 : i32
    return %c0_i32, %c0_i32_0 : i32, i32
  }
  func.func @transform_7(%arg0: i32) -> (i32, i32) {
    %c0_i32 = arith.constant 0 : i32
    %c0_i32_0 = arith.constant 0 : i32
    %c0_i32_1 = arith.constant 0 : i32
    return %c0_i32, %c0_i32_0 : i32, i32
  }
  func.func @transform_8(%arg0: i32) -> (i32, i32) {
    %c0_i32 = arith.constant 0 : i32
    %c0_i32_0 = arith.constant 0 : i32
    %c0_i32_1 = arith.constant 0 : i32
    return %c0_i32, %c0_i32_0 : i32, i32
  }
  func.func @transform_9(%arg0: i32) -> (i32, i32) {
    %c0_i32 = arith.constant 0 : i32
    %c0_i32_0 = arith.constant 0 : i32
    %c0_i32_1 = arith.constant 0 : i32
    return %c0_i32, %c0_i32_0 : i32, i32
  }
  func.func @transform_10(%arg0: i32) -> (i32, i32) {
    %c0_i32 = arith.constant 0 : i32
    %c0_i32_0 = arith.constant 0 : i32
    %c0_i32_1 = arith.constant 0 : i32
    return %c0_i32, %c0_i32_0 : i32, i32
  }
  func.func @transform_11(%arg0: i32) -> (i32, i32) {
    %c0_i32 = arith.constant 0 : i32
    %c0_i32_0 = arith.constant 0 : i32
    %c0_i32_1 = arith.constant 0 : i32
    return %c0_i32, %c0_i32_0 : i32, i32
  }
  func.func @transform_12(%arg0: i32) -> (i32, i32) {
    %c0_i32 = arith.constant 0 : i32
    %c0_i32_0 = arith.constant 0 : i32
    %c0_i32_1 = arith.constant 0 : i32
    return %c0_i32, %c0_i32_0 : i32, i32
  }
  func.func @transform_13(%arg0: i32) -> (i32, i32) {
    %c0_i32 = arith.constant 0 : i32
    %c0_i32_0 = arith.constant 0 : i32
    %c0_i32_1 = arith.constant 0 : i32
    return %c0_i32, %c0_i32_0 : i32, i32
  }
  func.func @transform_14(%arg0: i32) -> (i32, i32) {
    %c0_i32 = arith.constant 0 : i32
    %c0_i32_0 = arith.constant 0 : i32
    %c0_i32_1 = arith.constant 0 : i32
    return %c0_i32, %c0_i32_0 : i32, i32
  }
  func.func @transform_15(%arg0: i32) -> (i32, i32) {
    %c0_i32 = arith.constant 0 : i32
    %c0_i32_0 = arith.constant 0 : i32
    %c0_i32_1 = arith.constant 0 : i32
    return %c0_i32, %c0_i32_0 : i32, i32
  }
  func.func @transform_16(%arg0: i32) -> (i32, i32) {
    %c0_i32 = arith.constant 0 : i32
    %c0_i32_0 = arith.constant 0 : i32
    return %arg0, %c0_i32 : i32, i32
  }
}

</mosaic_0001>

<llo_original>
// kernel: fused_forward.1
$region0: #{fused_forward.1}
  #allocation0 [shape = 'u32[]', space=smem, size = 0x4, offset = 0x4, fixed_abs, tag = 'smem constant byte address 0x4 - core index']
  #allocation1 [shape = 'u32[72,128]{1,0:T(1,128)}', space=vmem, size = 0x9000, scoped, tag = 'internal scratch']
  %s0 = inlined_call_operand.vmem [shape: f32[2,16,258], index: 0, kind: input, shape index: {}]
  %s1 = inlined_call_operand.vmem [shape: f32[32,48], index: 1, kind: input, shape index: {}]
  %s2 = inlined_call_operand.vmem [shape: f32[32,1], index: 2, kind: input, shape index: {}]
  %s3 = inlined_call_operand.vmem [shape: f32[64,96], index: 3, kind: input, shape index: {}]
  %s4 = inlined_call_operand.vmem [shape: f32[64,1], index: 4, kind: input, shape index: {}]
  %s5 = inlined_call_operand.vmem [shape: f32[128,192], index: 5, kind: input, shape index: {}]
  %s6 = inlined_call_operand.vmem [shape: f32[128,1], index: 6, kind: input, shape index: {}]
  %s7 = inlined_call_operand.vmem [shape: f32[255,130], index: 7, kind: input, shape index: {}]
  %s8 = inlined_call_operand.vmem [shape: f32[127,66], index: 8, kind: input, shape index: {}]
  %s9 = inlined_call_operand.vmem [shape: f32[63,34], index: 9, kind: input, shape index: {}]
  %s10 = inlined_call_operand.vmem [shape: f32[512,64], index: 10, kind: input, shape index: {}]
  %s11 = inlined_call_operand.vmem [shape: f32[1,64], index: 11, kind: input, shape index: {}]
  %s12 = inlined_call_operand.vmem [shape: f32[64,32], index: 12, kind: input, shape index: {}]
  %s13 = inlined_call_operand.vmem [shape: f32[1,32], index: 13, kind: input, shape index: {}]
  %s14 = inlined_call_operand.vmem [shape: f32[32,128], index: 14, kind: input, shape index: {}]
  %s15 = inlined_call_operand.vmem [shape: f32[1,128], index: 15, kind: input, shape index: {}]
  %s16 = inlined_call_operand.hbm [shape: f32[16,128], index: 16, kind: output, shape index: {}]
  %s17 = sld [smem:[#allocation0]]
  $region120: #{fused_forward.1} parent=0
    _
  %s19 = ssub.s32 1, %s17
  %s20 = scalar_select 0, %s19, %s17
  $region1: #{fused_forward.1} parent=0
    #allocation2 [shape = 'u8[49152]{0}', space=vmem, size = 0xc000, scoped, tag = 'input window, operand 0']
    #allocation3 [shape = 'u8[8192]{0}', space=vmem, size = 0x2000, scoped, tag = 'output window, operand 0']
    #allocation4 [shape = 's32[2]{0}', space=sflag, size = 0x8, scoped, tag = 'scoped memory for fused_forward.1']
    %21 = vsyncpa [#allocation4], 0
    %s22 = scalar_lea.sflag [#allocation4], 1
    %23 = vsyncpa %s22, 0
    loop: start=0, step=1, limit=4
    $region2: #{fused_forward.1} parent=1 // loop_pre_header
      _
    $region3: #{fused_forward.1} parent=1 // loop_header
      %s25 = sphi 0, %s29
      %p26 = scmp.ge.s32.totalorder %s25, 4
      %s35 = sphi 0, %s37
      %s38 = sphi 0, %s35
      %s39 = sphi 0, %s38
      %s55 = sphi 0, %s39
      %s59 = sphi 0, %s59
      %s61 = sphi 0, %s59
      %s62 = sphi 0, %s61
      %s76 = sphi 0, %s62
      %s80 = sphi 0, %s80
      %s82 = sphi 0, %s80
      %s83 = sphi 0, %s82
      %s97 = sphi 0, %s83
      %s101 = sphi 0, %s101
      %s103 = sphi 0, %s101
      %s104 = sphi 0, %s103
      %s118 = sphi 0, %s104
      %s122 = sphi 0, %s122
      %s124 = sphi 0, %s122
      %s125 = sphi 0, %s124
      %s139 = sphi 0, %s125
      %s143 = sphi 0, %s143
      %s145 = sphi 0, %s143
      %s146 = sphi 0, %s145
      %s160 = sphi 0, %s146
      %s164 = sphi 0, %s164
      %s166 = sphi 0, %s164
      %s167 = sphi 0, %s166
      %s181 = sphi 0, %s167
      %s185 = sphi 0, %s185
      %s187 = sphi 0, %s185
      %s188 = sphi 0, %s187
      %s202 = sphi 0, %s188
      %s206 = sphi 0, %s206
      %s208 = sphi 0, %s206
      %s209 = sphi 0, %s208
      %s223 = sphi 0, %s209
      %s227 = sphi 0, %s227
      %s229 = sphi 0, %s227
      %s230 = sphi 0, %s229
      %s244 = sphi 0, %s230
      %s248 = sphi 0, %s248
      %s250 = sphi 0, %s248
      %s251 = sphi 0, %s250
      %s265 = sphi 0, %s251
      %s269 = sphi 0, %s269
      %s271 = sphi 0, %s269
      %s272 = sphi 0, %s271
      %s286 = sphi 0, %s272
      %s290 = sphi 0, %s290
      %s292 = sphi 0, %s290
      %s293 = sphi 0, %s292
      %s307 = sphi 0, %s293
      %s311 = sphi 0, %s311
      %s313 = sphi 0, %s311
      %s314 = sphi 0, %s313
      %s328 = sphi 0, %s314
      %s332 = sphi 0, %s332
      %s334 = sphi 0, %s332
      %s335 = sphi 0, %s334
      %s349 = sphi 0, %s335
      %s353 = sphi 0, %s353
      %s355 = sphi 0, %s353
      %s356 = sphi 0, %s355
      %s370 = sphi 0, %s356
      %s376 = sphi 0, %s378
      %s379 = sphi 0, %s376
      %s380 = sphi 0, %s379
      %s396 = sphi 0, %s380
    $region4: #{fused_forward.1} parent=1 // loop_header_branch
      %28 = sbr.rel (%p26) target = $region8
    $region5: #{fused_forward.1} parent=1 // loop_body
      %s30 = ssub.s32 %s25, 1
      %s31 = ssub.s32 %s25, 2
      %s32 = sadd.s32 %s25, 1
      %s33 = ssub.s32 %s25, %s32
      %p34 = scmp.eq.s32.totalorder %s33, 0
      %s36 = sadd.s32 %s35, 1
      %s37 = scalar_select %p34, %s35, %s36
      %p40 = pneg %p34
      %p41 = scmp.eq.s32.totalorder %s25, 1
      %p42 = por %p40, %p41
      %p43 = scmp.ne.s32.totalorder %s35, %s38
      %p44 = scmp.eq.s32.totalorder %s25, 0
      %p45 = por %p43, %p44
      %p46 = scmp.ne.s32.totalorder %s35, %s38
      %p47 = scmp.eq.s32.totalorder %s30, 1
      %p48 = por %p46, %p47
      %p49 = scmp.ne.s32.totalorder %s38, %s39
      %p50 = scmp.eq.s32.totalorder %s30, 0
      %p51 = por %p49, %p50
      %p52 = scmp.ne.s32.totalorder %s38, %s39
      %p53 = scmp.eq.s32.totalorder %s31, 1
      %p54 = por %p52, %p53
      %p56 = scmp.ne.s32.totalorder %s39, %s55
      %p57 = scmp.eq.s32.totalorder %s31, 0
      %p58 = por %p56, %p57
      %s60 = sadd.s32 %s59, 1
      %p63 = scmp.eq.s32.totalorder %s25, 1
      %p64 = scmp.ne.s32.totalorder %s59, %s61
      %p65 = scmp.eq.s32.totalorder %s25, 0
      %p66 = por %p64, %p65
      %p67 = scmp.ne.s32.totalorder %s59, %s61
      %p68 = scmp.eq.s32.totalorder %s30, 1
      %p69 = por %p67, %p68
      %p70 = scmp.ne.s32.totalorder %s61, %s62
      %p71 = scmp.eq.s32.totalorder %s30, 0
      %p72 = por %p70, %p71
      %p73 = scmp.ne.s32.totalorder %s61, %s62
      %p74 = scmp.eq.s32.totalorder %s31, 1
      %p75 = por %p73, %p74
      %p77 = scmp.ne.s32.totalorder %s62, %s76
      %p78 = scmp.eq.s32.totalorder %s31, 0
      %p79 = por %p77, %p78
      %s81 = sadd.s32 %s80, 1
      %p84 = scmp.eq.s32.totalorder %s25, 1
      %p85 = scmp.ne.s32.totalorder %s80, %s82
      %p86 = scmp.eq.s32.totalorder %s25, 0
      %p87 = por %p85, %p86
      %p88 = scmp.ne.s32.totalorder %s80, %s82
      %p89 = scmp.eq.s32.totalorder %s30, 1
      %p90 = por %p88, %p89
      %p91 = scmp.ne.s32.totalorder %s82, %s83
      %p92 = scmp.eq.s32.totalorder %s30, 0
      %p93 = por %p91, %p92
      %p94 = scmp.ne.s32.totalorder %s82, %s83
      %p95 = scmp.eq.s32.totalorder %s31, 1
      %p96 = por %p94, %p95
      %p98 = scmp.ne.s32.totalorder %s83, %s97
      %p99 = scmp.eq.s32.totalorder %s31, 0
      %p100 = por %p98, %p99
      %s102 = sadd.s32 %s101, 1
      %p105 = scmp.eq.s32.totalorder %s25, 1
      %p106 = scmp.ne.s32.totalorder %s101, %s103
      %p107 = scmp.eq.s32.totalorder %s25, 0
      %p108 = por %p106, %p107
      %p109 = scmp.ne.s32.totalorder %s101, %s103
      %p110 = scmp.eq.s32.totalorder %s30, 1
      %p111 = por %p109, %p110
      %p112 = scmp.ne.s32.totalorder %s103, %s104
      %p113 = scmp.eq.s32.totalorder %s30, 0
      %p114 = por %p112, %p113
      %p115 = scmp.ne.s32.totalorder %s103, %s104
      %p116 = scmp.eq.s32.totalorder %s31, 1
      %p117 = por %p115, %p116
      %p119 = scmp.ne.s32.totalorder %s104, %s118
      %p120 = scmp.eq.s32.totalorder %s31, 0
      %p121 = por %p119, %p120
      %s123 = sadd.s32 %s122, 1
      %p126 = scmp.eq.s32.totalorder %s25, 1
      %p127 = scmp.ne.s32.totalorder %s122, %s124
      %p128 = scmp.eq.s32.totalorder %s25, 0
      %p129 = por %p127, %p128
      %p130 = scmp.ne.s32.totalorder %s122, %s124
      %p131 = scmp.eq.s32.totalorder %s30, 1
      %p132 = por %p130, %p131
      %p133 = scmp.ne.s32.totalorder %s124, %s125
      %p134 = scmp.eq.s32.totalorder %s30, 0
      %p135 = por %p133, %p134
      %p136 = scmp.ne.s32.totalorder %s124, %s125
      %p137 = scmp.eq.s32.totalorder %s31, 1
      %p138 = por %p136, %p137
      %p140 = scmp.ne.s32.totalorder %s125, %s139
      %p141 = scmp.eq.s32.totalorder %s31, 0
      %p142 = por %p140, %p141
      %s144 = sadd.s32 %s143, 1
      %p147 = scmp.eq.s32.totalorder %s25, 1
      %p148 = scmp.ne.s32.totalorder %s143, %s145
      %p149 = scmp.eq.s32.totalorder %s25, 0
      %p150 = por %p148, %p149
      %p151 = scmp.ne.s32.totalorder %s143, %s145
      %p152 = scmp.eq.s32.totalorder %s30, 1
      %p153 = por %p151, %p152
      %p154 = scmp.ne.s32.totalorder %s145, %s146
      %p155 = scmp.eq.s32.totalorder %s30, 0
      %p156 = por %p154, %p155
      %p157 = scmp.ne.s32.totalorder %s145, %s146
      %p158 = scmp.eq.s32.totalorder %s31, 1
      %p159 = por %p157, %p158
      %p161 = scmp.ne.s32.totalorder %s146, %s160
      %p162 = scmp.eq.s32.totalorder %s31, 0
      %p163 = por %p161, %p162
      %s165 = sadd.s32 %s164, 1
      %p168 = scmp.eq.s32.totalorder %s25, 1
      %p169 = scmp.ne.s32.totalorder %s164, %s166
      %p170 = scmp.eq.s32.totalorder %s25, 0
      %p171 = por %p169, %p170
      %p172 = scmp.ne.s32.totalorder %s164, %s166
      %p173 = scmp.eq.s32.totalorder %s30, 1
      %p174 = por %p172, %p173
      %p175 = scmp.ne.s32.totalorder %s166, %s167
      %p176 = scmp.eq.s32.totalorder %s30, 0
      %p177 = por %p175, %p176
      %p178 = scmp.ne.s32.totalorder %s166, %s167
      %p179 = scmp.eq.s32.totalorder %s31, 1
      %p180 = por %p178, %p179
      %p182 = scmp.ne.s32.totalorder %s167, %s181
      %p183 = scmp.eq.s32.totalorder %s31, 0
      %p184 = por %p182, %p183
      %s186 = sadd.s32 %s185, 1
      %p189 = scmp.eq.s32.totalorder %s25, 1
      %p190 = scmp.ne.s32.totalorder %s185, %s187
      %p191 = scmp.eq.s32.totalorder %s25, 0
      %p192 = por %p190, %p191
      %p193 = scmp.ne.s32.totalorder %s185, %s187
      %p194 = scmp.eq.s32.totalorder %s30, 1
      %p195 = por %p193, %p194
      %p196 = scmp.ne.s32.totalorder %s187, %s188
      %p197 = scmp.eq.s32.totalorder %s30, 0
      %p198 = por %p196, %p197
      %p199 = scmp.ne.s32.totalorder %s187, %s188
      %p200 = scmp.eq.s32.totalorder %s31, 1
      %p201 = por %p199, %p200
      %p203 = scmp.ne.s32.totalorder %s188, %s202
      %p204 = scmp.eq.s32.totalorder %s31, 0
      %p205 = por %p203, %p204
      %s207 = sadd.s32 %s206, 1
      %p210 = scmp.eq.s32.totalorder %s25, 1
      %p211 = scmp.ne.s32.totalorder %s206, %s208
      %p212 = scmp.eq.s32.totalorder %s25, 0
      %p213 = por %p211, %p212
      %p214 = scmp.ne.s32.totalorder %s206, %s208
      %p215 = scmp.eq.s32.totalorder %s30, 1
      %p216 = por %p214, %p215
      %p217 = scmp.ne.s32.totalorder %s208, %s209
      %p218 = scmp.eq.s32.totalorder %s30, 0
      %p219 = por %p217, %p218
      %p220 = scmp.ne.s32.totalorder %s208, %s209
      %p221 = scmp.eq.s32.totalorder %s31, 1
      %p222 = por %p220, %p221
      %p224 = scmp.ne.s32.totalorder %s209, %s223
      %p225 = scmp.eq.s32.totalorder %s31, 0
      %p226 = por %p224, %p225
      %s228 = sadd.s32 %s227, 1
      %p231 = scmp.eq.s32.totalorder %s25, 1
      %p232 = scmp.ne.s32.totalorder %s227, %s229
      %p233 = scmp.eq.s32.totalorder %s25, 0
      %p234 = por %p232, %p233
      %p235 = scmp.ne.s32.totalorder %s227, %s229
      %p236 = scmp.eq.s32.totalorder %s30, 1
      %p237 = por %p235, %p236
      %p238 = scmp.ne.s32.totalorder %s229, %s230
      %p239 = scmp.eq.s32.totalorder %s30, 0
      %p240 = por %p238, %p239
      %p241 = scmp.ne.s32.totalorder %s229, %s230
      %p242 = scmp.eq.s32.totalorder %s31, 1
      %p243 = por %p241, %p242
      %p245 = scmp.ne.s32.totalorder %s230, %s244
      %p246 = scmp.eq.s32.totalorder %s31, 0
      %p247 = por %p245, %p246
      %s249 = sadd.s32 %s248, 1
      %p252 = scmp.eq.s32.totalorder %s25, 1
      %p253 = scmp.ne.s32.totalorder %s248, %s250
      %p254 = scmp.eq.s32.totalorder %s25, 0
      %p255 = por %p253, %p254
      %p256 = scmp.ne.s32.totalorder %s248, %s250
      %p257 = scmp.eq.s32.totalorder %s30, 1
      %p258 = por %p256, %p257
      %p259 = scmp.ne.s32.totalorder %s250, %s251
      %p260 = scmp.eq.s32.totalorder %s30, 0
      %p261 = por %p259, %p260
      %p262 = scmp.ne.s32.totalorder %s250, %s251
      %p263 = scmp.eq.s32.totalorder %s31, 1
      %p264 = por %p262, %p263
      %p266 = scmp.ne.s32.totalorder %s251, %s265
      %p267 = scmp.eq.s32.totalorder %s31, 0
      %p268 = por %p266, %p267
      %s270 = sadd.s32 %s269, 1
      %p273 = scmp.eq.s32.totalorder %s25, 1
      %p274 = scmp.ne.s32.totalorder %s269, %s271
      %p275 = scmp.eq.s32.totalorder %s25, 0
      %p276 = por %p274, %p275
      %p277 = scmp.ne.s32.totalorder %s269, %s271
      %p278 = scmp.eq.s32.totalorder %s30, 1
      %p279 = por %p277, %p278
      %p280 = scmp.ne.s32.totalorder %s271, %s272
      %p281 = scmp.eq.s32.totalorder %s30, 0
      %p282 = por %p280, %p281
      %p283 = scmp.ne.s32.totalorder %s271, %s272
      %p284 = scmp.eq.s32.totalorder %s31, 1
      %p285 = por %p283, %p284
      %p287 = scmp.ne.s32.totalorder %s272, %s286
      %p288 = scmp.eq.s32.totalorder %s31, 0
      %p289 = por %p287, %p288
      %s291 = sadd.s32 %s290, 1
      %p294 = scmp.eq.s32.totalorder %s25, 1
      %p295 = scmp.ne.s32.totalorder %s290, %s292
      %p296 = scmp.eq.s32.totalorder %s25, 0
      %p297 = por %p295, %p296
      %p298 = scmp.ne.s32.totalorder %s290, %s292
      %p299 = scmp.eq.s32.totalorder %s30, 1
      %p300 = por %p298, %p299
      %p301 = scmp.ne.s32.totalorder %s292, %s293
      %p302 = scmp.eq.s32.totalorder %s30, 0
      %p303 = por %p301, %p302
      %p304 = scmp.ne.s32.totalorder %s292, %s293
      %p305 = scmp.eq.s32.totalorder %s31, 1
      %p306 = por %p304, %p305
      %p308 = scmp.ne.s32.totalorder %s293, %s307
      %p309 = scmp.eq.s32.totalorder %s31, 0
      %p310 = por %p308, %p309
      %s312 = sadd.s32 %s311, 1
      %p315 = scmp.eq.s32.totalorder %s25, 1
      %p316 = scmp.ne.s32.totalorder %s311, %s313
      %p317 = scmp.eq.s32.totalorder %s25, 0
      %p318 = por %p316, %p317
      %p319 = scmp.ne.s32.totalorder %s311, %s313
      %p320 = scmp.eq.s32.totalorder %s30, 1
      %p321 = por %p319, %p320
      %p322 = scmp.ne.s32.totalorder %s313, %s314
      %p323 = scmp.eq.s32.totalorder %s30, 0
      %p324 = por %p322, %p323
      %p325 = scmp.ne.s32.totalorder %s313, %s314
      %p326 = scmp.eq.s32.totalorder %s31, 1
      %p327 = por %p325, %p326
      %p329 = scmp.ne.s32.totalorder %s314, %s328
      %p330 = scmp.eq.s32.totalorder %s31, 0
      %p331 = por %p329, %p330
      %s333 = sadd.s32 %s332, 1
      %p336 = scmp.eq.s32.totalorder %s25, 1
      %p337 = scmp.ne.s32.totalorder %s332, %s334
      %p338 = scmp.eq.s32.totalorder %s25, 0
      %p339 = por %p337, %p338
      %p340 = scmp.ne.s32.totalorder %s332, %s334
      %p341 = scmp.eq.s32.totalorder %s30, 1
      %p342 = por %p340, %p341
      %p343 = scmp.ne.s32.totalorder %s334, %s335
      %p344 = scmp.eq.s32.totalorder %s30, 0
      %p345 = por %p343, %p344
      %p346 = scmp.ne.s32.totalorder %s334, %s335
      %p347 = scmp.eq.s32.totalorder %s31, 1
      %p348 = por %p346, %p347
      %p350 = scmp.ne.s32.totalorder %s335, %s349
      %p351 = scmp.eq.s32.totalorder %s31, 0
      %p352 = por %p350, %p351
      %s354 = sadd.s32 %s353, 1
      %p357 = scmp.eq.s32.totalorder %s25, 1
      %p358 = scmp.ne.s32.totalorder %s353, %s355
      %p359 = scmp.eq.s32.totalorder %s25, 0
      %p360 = por %p358, %p359
      %p361 = scmp.ne.s32.totalorder %s353, %s355
      %p362 = scmp.eq.s32.totalorder %s30, 1
      %p363 = por %p361, %p362
      %p364 = scmp.ne.s32.totalorder %s355, %s356
      %p365 = scmp.eq.s32.totalorder %s30, 0
      %p366 = por %p364, %p365
      %p367 = scmp.ne.s32.totalorder %s355, %s356
      %p368 = scmp.eq.s32.totalorder %s31, 1
      %p369 = por %p367, %p368
      %p371 = scmp.ne.s32.totalorder %s356, %s370
      %p372 = scmp.eq.s32.totalorder %s31, 0
      %p373 = por %p371, %p372
      %s374 = ssub.s32 %s25, %s32
      %p375 = scmp.eq.s32.totalorder %s374, 0
      %s377 = sadd.s32 %s376, 1
      %s378 = scalar_select %p375, %s376, %s377
      %p381 = pneg %p375
      %p382 = scmp.eq.s32.totalorder %s25, 1
      %p383 = por %p381, %p382
      %p384 = scmp.ne.s32.totalorder %s376, %s379
      %p385 = scmp.eq.s32.totalorder %s25, 0
      %p386 = por %p384, %p385
      %p387 = scmp.ne.s32.totalorder %s376, %s379
      %p388 = scmp.eq.s32.totalorder %s30, 1
      %p389 = por %p387, %p388
      %p390 = scmp.ne.s32.totalorder %s379, %s380
      %p391 = scmp.eq.s32.totalorder %s30, 0
      %p392 = por %p390, %p391
      %p393 = scmp.ne.s32.totalorder %s379, %s380
      %p394 = scmp.eq.s32.totalorder %s31, 1
      %p395 = por %p393, %p394
      %p397 = scmp.ne.s32.totalorder %s380, %s396
      %p398 = scmp.eq.s32.totalorder %s31, 0
      %p399 = por %p397, %p398
      %p400 = scmp.le.s32.totalorder 1, %s25
      %p401 = scmp.lt.s32.totalorder %s25, 3
      %p402 = pnand %p400, %p401
      %p403 = pneg %p402
      // Predicated region
      $region9: #{fused_forward.1} parent=5 // pred_check
        _
      $region10: #{fused_forward.1} parent=5 // pred_check_branch
        %405 = sbr.rel (%p402) target = $region12
      $region11: #{fused_forward.1} parent=5 // pred_region
        %s406 = ssub.s32 %s25, 1
        // Predicated region
        $region13: #{fused_forward.1} parent=11 // pred_check
          %p407 = pneg %p72
        $region14: #{fused_forward.1} parent=11 // pred_check_branch
          %409 = sbr.rel (%p407) target = $region16
        $region15: #{fused_forward.1} parent=11 // pred_region
          _
        $region16: #{fused_forward.1} parent=11 // pred_fallthru
          _
        // Predicated region
        $region17: #{fused_forward.1} parent=11 // pred_check
          %p410 = pneg %p93
        $region18: #{fused_forward.1} parent=11 // pred_check_branch
          %412 = sbr.rel (%p410) target = $region20
        $region19: #{fused_forward.1} parent=11 // pred_region
          _
        $region20: #{fused_forward.1} parent=11 // pred_fallthru
          _
        // Predicated region
        $region21: #{fused_forward.1} parent=11 // pred_check
          %p413 = pneg %p114
        $region22: #{fused_forward.1} parent=11 // pred_check_branch
          %415 = sbr.rel (%p413) target = $region24
        $region23: #{fused_forward.1} parent=11 // pred_region
          _
        $region24: #{fused_forward.1} parent=11 // pred_fallthru
          _
        // Predicated region
        $region25: #{fused_forward.1} parent=11 // pred_check
          %p416 = pneg %p135
        $region26: #{fused_forward.1} parent=11 // pred_check_branch
          %418 = sbr.rel (%p416) target = $region28
        $region27: #{fused_forward.1} parent=11 // pred_region
          _
        $region28: #{fused_forward.1} parent=11 // pred_fallthru
          _
        // Predicated region
        $region29: #{fused_forward.1} parent=11 // pred_check
          %p419 = pneg %p156
        $region30: #{fused_forward.1} parent=11 // pred_check_branch
          %421 = sbr.rel (%p419) target = $region32
        $region31: #{fused_forward.1} parent=11 // pred_region
          _
        $region32: #{fused_forward.1} parent=11 // pred_fallthru
          _
        // Predicated region
        $region33: #{fused_forward.1} parent=11 // pred_check
          %p422 = pneg %p177
        $region34: #{fused_forward.1} parent=11 // pred_check_branch
          %424 = sbr.rel (%p422) target = $region36
        $region35: #{fused_forward.1} parent=11 // pred_region
          _
        $region36: #{fused_forward.1} parent=11 // pred_fallthru
          _
        // Predicated region
        $region37: #{fused_forward.1} parent=11 // pred_check
          %p425 = pneg %p198
        $region38: #{fused_forward.1} parent=11 // pred_check_branch
          %427 = sbr.rel (%p425) target = $region40
        $region39: #{fused_forward.1} parent=11 // pred_region
          _
        $region40: #{fused_forward.1} parent=11 // pred_fallthru
          _
        // Predicated region
        $region41: #{fused_forward.1} parent=11 // pred_check
          %p428 = pneg %p219
        $region42: #{fused_forward.1} parent=11 // pred_check_branch
          %430 = sbr.rel (%p428) target = $region44
        $region43: #{fused_forward.1} parent=11 // pred_region
          _
        $region44: #{fused_forward.1} parent=11 // pred_fallthru
          _
        // Predicated region
        $region45: #{fused_forward.1} parent=11 // pred_check
          %p431 = pneg %p240
        $region46: #{fused_forward.1} parent=11 // pred_check_branch
          %433 = sbr.rel (%p431) target = $region48
        $region47: #{fused_forward.1} parent=11 // pred_region
          _
        $region48: #{fused_forward.1} parent=11 // pred_fallthru
          _
        // Predicated region
        $region49: #{fused_forward.1} parent=11 // pred_check
          %p434 = pneg %p261
        $region50: #{fused_forward.1} parent=11 // pred_check_branch
          %436 = sbr.rel (%p434) target = $region52
        $region51: #{fused_forward.1} parent=11 // pred_region
          _
        $region52: #{fused_forward.1} parent=11 // pred_fallthru
          _
        // Predicated region
        $region53: #{fused_forward.1} parent=11 // pred_check
          %p437 = pneg %p282
        $region54: #{fused_forward.1} parent=11 // pred_check_branch
          %439 = sbr.rel (%p437) target = $region56
        $region55: #{fused_forward.1} parent=11 // pred_region
          _
        $region56: #{fused_forward.1} parent=11 // pred_fallthru
          _
        // Predicated region
        $region57: #{fused_forward.1} parent=11 // pred_check
          %p440 = pneg %p303
        $region58: #{fused_forward.1} parent=11 // pred_check_branch
          %442 = sbr.rel (%p440) target = $region60
        $region59: #{fused_forward.1} parent=11 // pred_region
          _
        $region60: #{fused_forward.1} parent=11 // pred_fallthru
          _
        // Predicated region
        $region61: #{fused_forward.1} parent=11 // pred_check
          %p443 = pneg %p324
        $region62: #{fused_forward.1} parent=11 // pred_check_branch
          %445 = sbr.rel (%p443) target = $region64
        $region63: #{fused_forward.1} parent=11 // pred_region
          _
        $region64: #{fused_forward.1} parent=11 // pred_fallthru
          _
        // Predicated region
        $region65: #{fused_forward.1} parent=11 // pred_check
          %p446 = pneg %p345
        $region66: #{fused_forward.1} parent=11 // pred_check_branch
          %448 = sbr.rel (%p446) target = $region68
        $region67: #{fused_forward.1} parent=11 // pred_region
          _
        $region68: #{fused_forward.1} parent=11 // pred_fallthru
          _
        // Predicated region
        $region69: #{fused_forward.1} parent=11 // pred_check
          %p449 = pneg %p366
        $region70: #{fused_forward.1} parent=11 // pred_check_branch
          %451 = sbr.rel (%p449) target = $region72
        $region71: #{fused_forward.1} parent=11 // pred_region
          _
        $region72: #{fused_forward.1} parent=11 // pred_fallthru
          _
      $region12: #{fused_forward.1} parent=5 // pred_fallthru
        _
      %p452 = scmp.lt.s32.totalorder %s25, 2
      // Predicated region
      $region73: #{fused_forward.1} parent=5 // pred_check
        %p453 = pneg %p452
      $region74: #{fused_forward.1} parent=5 // pred_check_branch
        %455 = sbr.rel (%p453) target = $region76
      $region75: #{fused_forward.1} parent=5 // pred_region
        // Predicated region
        $region77: #{fused_forward.1} parent=75 // pred_check
          %p456 = pneg %p45
        $region78: #{fused_forward.1} parent=75 // pred_check_branch
          %458 = sbr.rel (%p456) target = $region80
        $region79: #{fused_forward.1} parent=75 // pred_region
          %s459 = sand.u32 %s35, 1
          %s460 = sand.u32 %s35, 1
          %s461 = smul.addr %s460, 48
          %s462 = scalar_lea.vmem [#allocation2], %s461
          %s463 = smul.addr %s25, 3
          %s464 = smul.addr %s463, 8
          %s465 = scalar_lea.vmem %s0, %s464
          // Predicated region
          $region81: #{fused_forward.1} parent=79 // pred_check
            _
          $region82: #{fused_forward.1} parent=79 // pred_check_branch
            %467 = sbr.rel (0) target = $region84
          $region83: #{fused_forward.1} parent=79 // pred_region
            // Predicated region
            $region85: #{fused_forward.1} parent=83 // pred_check
              _
            $region86: #{fused_forward.1} parent=83 // pred_check_branch
              %469 = sbr.rel (0) target = $region88
            $region87: #{fused_forward.1} parent=83 // pred_region
              loop: start=0, step=1, limit=1
              $region89: #{fused_forward.1} parent=87 // loop_pre_header
                _
              $region90: #{fused_forward.1} parent=87 // loop_header
                %s471 = sphi 0, %s475
                %p472 = scmp.ge.s32.totalorder %s471, 1
                %s476 = sphi %s465, %s465
                %s477 = sphi %s462, %s462
              $region91: #{fused_forward.1} parent=87 // loop_header_branch
                %474 = sbr.rel (%p472) target = $region95
              $region92: #{fused_forward.1} parent=87 // loop_body
                %v478 = vld [vmem:[%s476] sm:$0xff]
                %479 = vst [vmem:[%s477] sm:$0xff] %v478
                %v480 = vld [vmem:[%s476 + $0x8] sm:$0xff]
                %481 = vst [vmem:[%s477 + $0x8] sm:$0xff] %v480
                %v482 = vld [vmem:[%s476 + $0x10] sm:$0xff]
                %483 = vst [vmem:[%s477 + $0x10] sm:$0xff] %v482
                %v484 = vld [vmem:[%s476 + $0x30] sm:$0xff]
                %485 = vst [vmem:[%s477 + $0x18] sm:$0xff] %v484
                %v486 = vld [vmem:[%s476 + $0x38] sm:$0xff]
                %487 = vst [vmem:[%s477 + $0x20] sm:$0xff] %v486
                %v488 = vld [vmem:[%s476 + $0x40] sm:$0xff]
                %489 = vst [vmem:[%s477 + $0x28] sm:$0xff] %v488
              $region93: #{fused_forward.1} parent=87 // loop_footer
                %s475 = sadd.s32 1, %s471
              $region94: #{fused_forward.1} parent=87 // loop_footer_branch
                %470 = sbr.rel target = $region90
              $region95: #{fused_forward.1} parent=87 // loop_exit
                _
            $region88: #{fused_forward.1} parent=83 // pred_fallthru
              _
            // Predicated region
            $region96: #{fused_forward.1} parent=83 // pred_check
              _
            $region97: #{fused_forward.1} parent=83 // pred_check_branch
              %491 = sbr.rel target = $region99
            $region98: #{fused_forward.1} parent=83 // pred_region
              _
            $region99: #{fused_forward.1} parent=83 // pred_fallthru
              _
          $region84: #{fused_forward.1} parent=79 // pred_fallthru
            _
          %492 = vnop
        $region80: #{fused_forward.1} parent=75 // pred_fallthru
          _
      $region76: #{fused_forward.1} parent=5 // pred_fallthru
        _
      %p493 = scmp.le.s32.totalorder 1, %s25
      %p494 = scmp.lt.s32.totalorder %s25, 3
      %p495 = pnand %p493, %p494
      %p496 = pneg %p495
      // Predicated region
      $region100: #{fused_forward.1} parent=5 // pred_check
        _
      $region101: #{fused_forward.1} parent=5 // pred_check_branch
        %498 = sbr.rel (%p495) target = $region103
      $region102: #{fused_forward.1} parent=5 // pred_region
        %s499 = ssub.s32 %s25, 1
        %s500 = sand.u32 %s38, 1
        %s501 = sand.u32 %s38, 1
        %s502 = smul.addr %s501, 48
        %s503 = scalar_lea.vmem [#allocation2], %s502
        // Predicated region
        $region104: #{fused_forward.1} parent=102 // pred_check
          %p504 = pneg %p51
        $region105: #{fused_forward.1} parent=102 // pred_check_branch
          %506 = sbr.rel (%p504) target = $region107
        $region106: #{fused_forward.1} parent=102 // pred_region
          _
        $region107: #{fused_forward.1} parent=102 // pred_fallthru
          _
        %s507 = sand.u32 %s38, 1
        %s508 = sand.u32 %s38, 1
        %s509 = smul.addr %s508, 48
        %s510 = scalar_lea.vmem [#allocation2], %s509
        %p511 = pneg %p51
        %p512 = pneg %p48
        %p513 = pneg %p72
        %p514 = pneg %p69
        %p515 = pneg %p93
        %p516 = pneg %p90
        %p517 = pneg %p114
        %p518 = pneg %p111
        %p519 = pneg %p135
        %p520 = pneg %p132
        %p521 = pneg %p156
        %p522 = pneg %p153
        %p523 = pneg %p177
        %p524 = pneg %p174
        %p525 = pneg %p198
        %p526 = pneg %p195
        %p527 = pneg %p219
        %p528 = pneg %p216
        %p529 = pneg %p240
        %p530 = pneg %p237
        %p531 = pneg %p261
        %p532 = pneg %p258
        %p533 = pneg %p282
        %p534 = pneg %p279
        %p535 = pneg %p303
        %p536 = pneg %p300
        %p537 = pneg %p324
        %p538 = pneg %p321
        %p539 = pneg %p345
        %p540 = pneg %p342
        %p541 = pneg %p366
        %p542 = pneg %p363
        %p543 = pneg %p392
        %p544 = pneg %p389
        %s545 = sand.u32 %s379, 1
        %s546 = scalar_lea.sflag [#allocation4], %s545
        %s547 = sand.u32 %s379, 1
        %s548 = smul.addr %s547, 8
        %s549 = scalar_lea.vmem [#allocation3], %s548
        %v550 = vld [vmem:[%s503] sm:$0xff]
        %v551 = vld [vmem:[%s503 + $0x8] sm:$0xff]
        %v552 = vld [vmem:[%s503 + $0x10] sm:$0xff]
        %s553 = scalar_lea.vmem %s503, 24 [#allocation2]
        %v554 = vld [vmem:[%s553] sm:$0xff]
        %v555 = vld [vmem:[%s553 + $0x8] sm:$0xff]
        %v556 = vld [vmem:[%s553 + $0x10] sm:$0xff]
        %563 = vrot.lane.b32.xlu0 %v550, 127
        %v564 = vpop.permute.xlu0 %563
        %565 = vrot.lane.b32.xlu0 %v551, 127
        %v566 = vpop.permute.xlu0 %565
        %567 = vrot.lane.b32.xlu0 %v552, 127
        %v568 = vpop.permute.xlu0 %567
        %569 = vrot.lane.b32.xlu0 %v554, 127
        %v570 = vpop.permute.xlu0 %569
        %571 = vrot.lane.b32.xlu0 %v555, 127
        %v572 = vpop.permute.xlu0 %571
        %573 = vrot.lane.b32.xlu0 %v556, 127
        %v574 = vpop.permute.xlu0 %573
        %vm575 = vcmask 1039360
        %v576 = vsel %vm575, %v564, %v566
        %v577 = vsel %vm575, %v566, %v568
        %v578 = vsel %vm575, %v570, %v572
        %v579 = vsel %vm575, %v572, %v574
        %584 = vrot.lane.b32.xlu0 %v550, 126
        %v585 = vpop.permute.xlu0 %584
        %586 = vrot.lane.b32.xlu0 %v551, 126
        %v587 = vpop.permute.xlu0 %586
        %588 = vrot.lane.b32.xlu0 %v552, 126
        %v589 = vpop.permute.xlu0 %588
        %590 = vrot.lane.b32.xlu0 %v554, 126
        %v591 = vpop.permute.xlu0 %590
        %592 = vrot.lane.b32.xlu0 %v555, 126
        %v593 = vpop.permute.xlu0 %592
        %594 = vrot.lane.b32.xlu0 %v556, 126
        %v595 = vpop.permute.xlu0 %594
        %vm596 = vcmask 1031168
        %v597 = vsel %vm596, %v585, %v587
        %v598 = vsel %vm596, %v587, %v589
        %v599 = vsel %vm596, %v591, %v593
        %v600 = vsel %vm596, %v593, %v595
        %v605 = vld [vmem:[%s1] sm:$0xff]
        %v606 = vld [vmem:[%s1 + $0x8] sm:$0xff]
        %v607 = vld [vmem:[%s1 + $0x10] sm:$0xff]
        %v608 = vld [vmem:[%s1 + $0x18] sm:$0xff]
        %v609 = vld [vmem:[%s2] sm:$0xff]
        %v610 = vld [vmem:[%s2 + $0x8] sm:$0xff]
        %v611 = vld [vmem:[%s2 + $0x10] sm:$0xff]
        %v612 = vld [vmem:[%s2 + $0x18] sm:$0xff]
        %614 = vset.pattern.permute.xlu0 0
        %615 = vperm.xlu0 %614, %v609
        %v616 = vpop.permute.xlu0 %615
        %619 = vset.pattern.permute.xlu0 0
        %620 = vperm.xlu0 %619, %v610
        %v621 = vpop.permute.xlu0 %620
        %624 = vset.pattern.permute.xlu0 0
        %625 = vperm.xlu0 %624, %v611
        %v626 = vpop.permute.xlu0 %625
        %629 = vset.pattern.permute.xlu0 0
        %630 = vperm.xlu0 %629, %v612
        %v631 = vpop.permute.xlu0 %630
        %vm633 = vcmask 392192
        %v635 = vsel %vm633, %v605, 0
        %v638 = vsel %vm633, %v606, 0
        %v641 = vsel %vm633, %v607, 0
        %v644 = vsel %vm633, %v608, 0
        %646 = vmatpush.msra.mxu0 0.0
        %647 = vmatpush.msra.mxu0 0.0
        %648 = vmatpush.msra.mxu0 0.0
        %649 = vmatpush.msra.mxu0 0.0
        %650 = vmatpush.msra.mxu0 0.0
        %651 = vmatpush.msra.mxu0 0.0
        %652 = vmatpush.msra.mxu0 0.0
        %653 = vmatpush.msra.mxu0 0.0
        %654 = vmatpush.msra.mxu0 0.0
        %655 = vmatpush.msra.mxu0 0.0
        %656 = vmatpush.msra.mxu0 %v599
        %657 = vmatpush.msra.mxu0 %v597
        %658 = vmatpush.msra.mxu0 %v578
        %659 = vmatpush.msra.mxu0 %v576
        %660 = vmatpush.msra.mxu0 %v554
        %661 = vmatpush.msra.mxu0 %v550
        %662 = vmatmul.f32.gmra.mxu0 %v635
        %v663 = vpop.f32.mrf.mxu0
        %v664 = vadd.f32 %v616, %v663
        %665 = vmatmul.f32.gmra.mxu0 %v638
        %v666 = vpop.f32.mrf.mxu0
        %v667 = vadd.f32 %v621, %v666
        %668 = vmatmul.f32.gmra.mxu0 %v641
        %v669 = vpop.f32.mrf.mxu0
        %v670 = vadd.f32 %v626, %v669
        %671 = vmatmul.f32.gmra.mxu0 %v644
        %v672 = vpop.f32.mrf.mxu0
        %v673 = vadd.f32 %v631, %v672
        %674 = vdwg.mxu0
        %675 = vmatpush.msra.mxu0 0.0
        %676 = vmatpush.msra.mxu0 0.0
        %677 = vmatpush.msra.mxu0 0.0
        %678 = vmatpush.msra.mxu0 0.0
        %679 = vmatpush.msra.mxu0 0.0
        %680 = vmatpush.msra.mxu0 0.0
        %681 = vmatpush.msra.mxu0 0.0
        %682 = vmatpush.msra.mxu0 0.0
        %683 = vmatpush.msra.mxu0 0.0
        %684 = vmatpush.msra.mxu0 0.0
        %685 = vmatpush.msra.mxu0 %v600
        %686 = vmatpush.msra.mxu0 %v598
        %687 = vmatpush.msra.mxu0 %v579
        %688 = vmatpush.msra.mxu0 %v577
        %689 = vmatpush.msra.mxu0 %v555
        %690 = vmatpush.msra.mxu0 %v551
        %691 = vmatmul.f32.gmra.mxu0 %v635
        %v692 = vpop.f32.mrf.mxu0
        %v693 = vadd.f32 %v616, %v692
        %694 = vmatmul.f32.gmra.mxu0 %v638
        %v695 = vpop.f32.mrf.mxu0
        %v696 = vadd.f32 %v621, %v695
        %697 = vmatmul.f32.gmra.mxu0 %v641
        %v698 = vpop.f32.mrf.mxu0
        %v699 = vadd.f32 %v626, %v698
        %700 = vmatmul.f32.gmra.mxu0 %v644
        %v701 = vpop.f32.mrf.mxu0
        %v702 = vadd.f32 %v631, %v701
        %703 = vdwg.mxu0
        %v704 = vmax.f32 %v664, 0.0
        %v705 = vmax.f32 %v693, 0.0
        %v706 = vmax.f32 %v667, 0.0
        %v707 = vmax.f32 %v696, 0.0
        %v708 = vmax.f32 %v670, 0.0
        %v709 = vmax.f32 %v699, 0.0
        %v710 = vmax.f32 %v673, 0.0
        %v711 = vmax.f32 %v702, 0.0
        %720 = vrot.lane.b32.xlu0 %v704, 127
        %v721 = vpop.permute.xlu0 %720
        %722 = vrot.lane.b32.xlu0 %v705, 127
        %v723 = vpop.permute.xlu0 %722
        %724 = vrot.lane.b32.xlu0 %v706, 127
        %v725 = vpop.permute.xlu0 %724
        %726 = vrot.lane.b32.xlu0 %v707, 127
        %v727 = vpop.permute.xlu0 %726
        %728 = vrot.lane.b32.xlu0 %v708, 127
        %v729 = vpop.permute.xlu0 %728
        %730 = vrot.lane.b32.xlu0 %v709, 127
        %v731 = vpop.permute.xlu0 %730
        %732 = vrot.lane.b32.xlu0 %v710, 127
        %v733 = vpop.permute.xlu0 %732
        %734 = vrot.lane.b32.xlu0 %v711, 127
        %v735 = vpop.permute.xlu0 %734
        %v736 = vsel %vm575, %v721, %v723
        %v737 = vsel %vm575, %v725, %v727
        %v738 = vsel %vm575, %v729, %v731
        %v739 = vsel %vm575, %v733, %v735
        %v748 = vmax.f32 %v704, %v736
        %v749 = vmax.f32 %v705, %v723
        %v750 = vmax.f32 %v706, %v737
        %v751 = vmax.f32 %v707, %v727
        %v752 = vmax.f32 %v708, %v738
        %v753 = vmax.f32 %v709, %v731
        %v754 = vmax.f32 %v710, %v739
        %v755 = vmax.f32 %v711, %v735
        %v756 = vld [vmem:[%s7] sm:$0xff]
        %v757 = vld [vmem:[%s7 + $0x8] sm:$0xff]
        %v758 = vld [vmem:[%s7 + $0x10] sm:$0xff]
        %v759 = vld [vmem:[%s7 + $0x18] sm:$0xff]
        %v760 = vld [vmem:[%s7 + $0x20] sm:$0xff]
        %v761 = vld [vmem:[%s7 + $0x28] sm:$0xff]
        %v762 = vld [vmem:[%s7 + $0x30] sm:$0xff]
        %v763 = vld [vmem:[%s7 + $0x38] sm:$0xff]
        %v764 = vld [vmem:[%s7 + $0x40] sm:$0xff]
        %v765 = vld [vmem:[%s7 + $0x48] sm:$0xff]
        %v766 = vld [vmem:[%s7 + $0x50] sm:$0xff]
        %v767 = vld [vmem:[%s7 + $0x58] sm:$0xff]
        %v768 = vld [vmem:[%s7 + $0x60] sm:$0xff]
        %v769 = vld [vmem:[%s7 + $0x68] sm:$0xff]
        %v770 = vld [vmem:[%s7 + $0x70] sm:$0xff]
        %v771 = vld [vmem:[%s7 + $0x78] sm:$0xff]
        %v772 = vld [vmem:[%s7 + $0x80] sm:$0xff]
        %v773 = vld [vmem:[%s7 + $0x88] sm:$0xff]
        %v774 = vld [vmem:[%s7 + $0x90] sm:$0xff]
        %v775 = vld [vmem:[%s7 + $0x98] sm:$0xff]
        %v776 = vld [vmem:[%s7 + $0xa0] sm:$0xff]
        %v777 = vld [vmem:[%s7 + $0xa8] sm:$0xff]
        %v778 = vld [vmem:[%s7 + $0xb0] sm:$0xff]
        %v779 = vld [vmem:[%s7 + $0xb8] sm:$0xff]
        %v780 = vld [vmem:[%s7 + $0xc0] sm:$0xff]
        %v781 = vld [vmem:[%s7 + $0xc8] sm:$0xff]
        %v782 = vld [vmem:[%s7 + $0xd0] sm:$0xff]
        %v783 = vld [vmem:[%s7 + $0xd8] sm:$0xff]
        %v784 = vld [vmem:[%s7 + $0xe0] sm:$0xff]
        %v785 = vld [vmem:[%s7 + $0xe8] sm:$0xff]
        %v786 = vld [vmem:[%s7 + $0xf0] sm:$0xff]
        %v787 = vld [vmem:[%s7 + $0xf8] sm:$0xff]
        %v788 = vld [vmem:[%s7 + $0x100] sm:$0xff]
        %v789 = vld [vmem:[%s7 + $0x108] sm:$0xff]
        %v790 = vld [vmem:[%s7 + $0x110] sm:$0xff]
        %v791 = vld [vmem:[%s7 + $0x118] sm:$0xff]
        %v792 = vld [vmem:[%s7 + $0x120] sm:$0xff]
        %v793 = vld [vmem:[%s7 + $0x128] sm:$0xff]
        %v794 = vld [vmem:[%s7 + $0x130] sm:$0xff]
        %v795 = vld [vmem:[%s7 + $0x138] sm:$0xff]
        %v796 = vld [vmem:[%s7 + $0x140] sm:$0xff]
        %v797 = vld [vmem:[%s7 + $0x148] sm:$0xff]
        %v798 = vld [vmem:[%s7 + $0x150] sm:$0xff]
        %v799 = vld [vmem:[%s7 + $0x158] sm:$0xff]
        %v800 = vld [vmem:[%s7 + $0x160] sm:$0xff]
        %v801 = vld [vmem:[%s7 + $0x168] sm:$0xff]
        %v802 = vld [vmem:[%s7 + $0x170] sm:$0xff]
        %v803 = vld [vmem:[%s7 + $0x178] sm:$0xff]
        %v804 = vld [vmem:[%s7 + $0x180] sm:$0xff]
        %v805 = vld [vmem:[%s7 + $0x188] sm:$0xff]
        %v806 = vld [vmem:[%s7 + $0x190] sm:$0xff]
        %v807 = vld [vmem:[%s7 + $0x198] sm:$0xff]
        %v808 = vld [vmem:[%s7 + $0x1a0] sm:$0xff]
        %v809 = vld [vmem:[%s7 + $0x1a8] sm:$0xff]
        %v810 = vld [vmem:[%s7 + $0x1b0] sm:$0xff]
        %v811 = vld [vmem:[%s7 + $0x1b8] sm:$0xff]
        %v812 = vld [vmem:[%s7 + $0x1c0] sm:$0xff]
        %v813 = vld [vmem:[%s7 + $0x1c8] sm:$0xff]
        %v814 = vld [vmem:[%s7 + $0x1d0] sm:$0xff]
        %v815 = vld [vmem:[%s7 + $0x1d8] sm:$0xff]
        %v816 = vld [vmem:[%s7 + $0x1e0] sm:$0xff]
        %v817 = vld [vmem:[%s7 + $0x1e8] sm:$0xff]
        %v818 = vld [vmem:[%s7 + $0x1f0] sm:$0x7f]
        %v819 = vld [vmem:[%s7 + $0x1f8] sm:$0x7f]
        %v821 = vsel %vm575, %v749, 0
        %v824 = vsel %vm575, %v751, 0
        %v827 = vsel %vm575, %v753, 0
        %v830 = vsel %vm575, %v755, 0
        %vm832 = vcmask 1046528
        %v834 = vsel %vm832, %v818, 0
        %v837 = vsel %vm832, %v819, 0
        %839 = vmatpush.msra.mxu0 %v786
        %840 = vmatpush.msra.mxu0 %v784
        %841 = vmatpush.msra.mxu0 %v782
        %842 = vmatpush.msra.mxu0 %v780
        %843 = vmatpush.msra.mxu0 %v778
        %844 = vmatpush.msra.mxu0 %v776
        %845 = vmatpush.msra.mxu0 %v774
        %846 = vmatpush.msra.mxu0 %v772
        %847 = vmatpush.msra.mxu0 %v770
        %848 = vmatpush.msra.mxu0 %v768
        %849 = vmatpush.msra.mxu0 %v766
        %850 = vmatpush.msra.mxu0 %v764
        %851 = vmatpush.msra.mxu0 %v762
        %852 = vmatpush.msra.mxu0 %v760
        %853 = vmatpush.msra.mxu0 %v758
        %854 = vmatpush.msra.mxu0 %v756
        %855 = vmatmul.f32.gmra.mxu0 %v748
        %v856 = vpop.f32.mrf.mxu0
        %v857 = vadd.f32 0.0, %v856
        %858 = vmatmul.f32.gmra.mxu0 %v750
        %v859 = vpop.f32.mrf.mxu0
        %v860 = vadd.f32 0.0, %v859
        %861 = vmatmul.f32.gmra.mxu0 %v752
        %v862 = vpop.f32.mrf.mxu0
        %v863 = vadd.f32 0.0, %v862
        %864 = vmatmul.f32.gmra.mxu0 %v754
        %v865 = vpop.f32.mrf.mxu0
        %v866 = vadd.f32 0.0, %v865
        %867 = vdwg.mxu0
        %868 = vmatpush.msra.mxu0 %v834
        %869 = vmatpush.msra.mxu0 %v816
        %870 = vmatpush.msra.mxu0 %v814
        %871 = vmatpush.msra.mxu0 %v812
        %872 = vmatpush.msra.mxu0 %v810
        %873 = vmatpush.msra.mxu0 %v808
        %874 = vmatpush.msra.mxu0 %v806
        %875 = vmatpush.msra.mxu0 %v804
        %876 = vmatpush.msra.mxu0 %v802
        %877 = vmatpush.msra.mxu0 %v800
        %878 = vmatpush.msra.mxu0 %v798
        %879 = vmatpush.msra.mxu0 %v796
        %880 = vmatpush.msra.mxu0 %v794
        %881 = vmatpush.msra.mxu0 %v792
        %882 = vmatpush.msra.mxu0 %v790
        %883 = vmatpush.msra.mxu0 %v788
        %884 = vmatmul.f32.gmra.mxu0 %v821
        %v885 = vpop.f32.mrf.mxu0
        %v886 = vadd.f32 %v857, %v885
        %887 = vmatmul.f32.gmra.mxu0 %v824
        %v888 = vpop.f32.mrf.mxu0
        %v889 = vadd.f32 %v860, %v888
        %890 = vmatmul.f32.gmra.mxu0 %v827
        %v891 = vpop.f32.mrf.mxu0
        %v892 = vadd.f32 %v863, %v891
        %893 = vmatmul.f32.gmra.mxu0 %v830
        %v894 = vpop.f32.mrf.mxu0
        %v895 = vadd.f32 %v866, %v894
        %896 = vdwg.mxu0
        %897 = vmatpush.msra.mxu0 %v787
        %898 = vmatpush.msra.mxu0 %v785
        %899 = vmatpush.msra.mxu0 %v783
        %900 = vmatpush.msra.mxu0 %v781
        %901 = vmatpush.msra.mxu0 %v779
        %902 = vmatpush.msra.mxu0 %v777
        %903 = vmatpush.msra.mxu0 %v775
        %904 = vmatpush.msra.mxu0 %v773
        %905 = vmatpush.msra.mxu0 %v771
        %906 = vmatpush.msra.mxu0 %v769
        %907 = vmatpush.msra.mxu0 %v767
        %908 = vmatpush.msra.mxu0 %v765
        %909 = vmatpush.msra.mxu0 %v763
        %910 = vmatpush.msra.mxu0 %v761
        %911 = vmatpush.msra.mxu0 %v759
        %912 = vmatpush.msra.mxu0 %v757
        %913 = vmatmul.f32.gmra.mxu0 %v748
        %v914 = vpop.f32.mrf.mxu0
        %v915 = vadd.f32 0.0, %v914
        %916 = vmatmul.f32.gmra.mxu0 %v750
        %v917 = vpop.f32.mrf.mxu0
        %v918 = vadd.f32 0.0, %v917
        %919 = vmatmul.f32.gmra.mxu0 %v752
        %v920 = vpop.f32.mrf.mxu0
        %v921 = vadd.f32 0.0, %v920
        %922 = vmatmul.f32.gmra.mxu0 %v754
        %v923 = vpop.f32.mrf.mxu0
        %v924 = vadd.f32 0.0, %v923
        %925 = vdwg.mxu0
        %926 = vmatpush.msra.mxu0 %v837
        %927 = vmatpush.msra.mxu0 %v817
        %928 = vmatpush.msra.mxu0 %v815
        %929 = vmatpush.msra.mxu0 %v813
        %930 = vmatpush.msra.mxu0 %v811
        %931 = vmatpush.msra.mxu0 %v809
        %932 = vmatpush.msra.mxu0 %v807
        %933 = vmatpush.msra.mxu0 %v805
        %934 = vmatpush.msra.mxu0 %v803
        %935 = vmatpush.msra.mxu0 %v801
        %936 = vmatpush.msra.mxu0 %v799
        %937 = vmatpush.msra.mxu0 %v797
        %938 = vmatpush.msra.mxu0 %v795
        %939 = vmatpush.msra.mxu0 %v793
        %940 = vmatpush.msra.mxu0 %v791
        %941 = vmatpush.msra.mxu0 %v789
        %942 = vmatmul.f32.gmra.mxu0 %v821
        %v943 = vpop.f32.mrf.mxu0
        %v944 = vadd.f32 %v915, %v943
        %945 = vmatmul.f32.gmra.mxu0 %v824
        %v946 = vpop.f32.mrf.mxu0
        %v947 = vadd.f32 %v918, %v946
        %948 = vmatmul.f32.gmra.mxu0 %v827
        %v949 = vpop.f32.mrf.mxu0
        %v950 = vadd.f32 %v921, %v949
        %951 = vmatmul.f32.gmra.mxu0 %v830
        %v952 = vpop.f32.mrf.mxu0
        %v953 = vadd.f32 %v924, %v952
        %954 = vdwg.mxu0
        %963 = vrot.lane.b32.xlu0 %v886, 127
        %v964 = vpop.permute.xlu0 %963
        %965 = vrot.lane.b32.xlu0 %v944, 127
        %v966 = vpop.permute.xlu0 %965
        %967 = vrot.lane.b32.xlu0 %v889, 127
        %v968 = vpop.permute.xlu0 %967
        %969 = vrot.lane.b32.xlu0 %v947, 127
        %v970 = vpop.permute.xlu0 %969
        %971 = vrot.lane.b32.xlu0 %v892, 127
        %v972 = vpop.permute.xlu0 %971
        %973 = vrot.lane.b32.xlu0 %v950, 127
        %v974 = vpop.permute.xlu0 %973
        %975 = vrot.lane.b32.xlu0 %v895, 127
        %v976 = vpop.permute.xlu0 %975
        %977 = vrot.lane.b32.xlu0 %v953, 127
        %v978 = vpop.permute.xlu0 %977
        %v979 = vsel %vm575, %v964, %v966
        %v980 = vsel %vm575, %v968, %v970
        %v981 = vsel %vm575, %v972, %v974
        %v982 = vsel %vm575, %v976, %v978
        %987 = vrot.lane.b32.xlu0 %v886, 126
        %v988 = vpop.permute.xlu0 %987
        %989 = vrot.lane.b32.xlu0 %v944, 126
        %v990 = vpop.permute.xlu0 %989
        %991 = vrot.lane.b32.xlu0 %v889, 126
        %v992 = vpop.permute.xlu0 %991
        %993 = vrot.lane.b32.xlu0 %v947, 126
        %v994 = vpop.permute.xlu0 %993
        %995 = vrot.lane.b32.xlu0 %v892, 126
        %v996 = vpop.permute.xlu0 %995
        %997 = vrot.lane.b32.xlu0 %v950, 126
        %v998 = vpop.permute.xlu0 %997
        %999 = vrot.lane.b32.xlu0 %v895, 126
        %v1000 = vpop.permute.xlu0 %999
        %1001 = vrot.lane.b32.xlu0 %v953, 126
        %v1002 = vpop.permute.xlu0 %1001
        %v1003 = vsel %vm596, %v988, %v990
        %v1004 = vsel %vm596, %v992, %v994
        %v1005 = vsel %vm596, %v996, %v998
        %v1006 = vsel %vm596, %v1000, %v1002
        %v1011 = vld [vmem:[%s3] sm:$0xff]
        %v1012 = vld [vmem:[%s3 + $0x8] sm:$0xff]
        %v1013 = vld [vmem:[%s3 + $0x10] sm:$0xff]
        %v1014 = vld [vmem:[%s3 + $0x18] sm:$0xff]
        %v1015 = vld [vmem:[%s3 + $0x20] sm:$0xff]
        %v1016 = vld [vmem:[%s3 + $0x28] sm:$0xff]
        %v1017 = vld [vmem:[%s3 + $0x30] sm:$0xff]
        %v1018 = vld [vmem:[%s3 + $0x38] sm:$0xff]
        %v1019 = vld [vmem:[%s4] sm:$0xff]
        %v1020 = vld [vmem:[%s4 + $0x8] sm:$0xff]
        %v1021 = vld [vmem:[%s4 + $0x10] sm:$0xff]
        %v1022 = vld [vmem:[%s4 + $0x18] sm:$0xff]
        %v1023 = vld [vmem:[%s4 + $0x20] sm:$0xff]
        %v1024 = vld [vmem:[%s4 + $0x28] sm:$0xff]
        %v1025 = vld [vmem:[%s4 + $0x30] sm:$0xff]
        %v1026 = vld [vmem:[%s4 + $0x38] sm:$0xff]
        %1028 = vset.pattern.permute.xlu0 0
        %1029 = vperm.xlu0 %1028, %v1019
        %v1030 = vpop.permute.xlu0 %1029
        %1033 = vset.pattern.permute.xlu0 0
        %1034 = vperm.xlu0 %1033, %v1020
        %v1035 = vpop.permute.xlu0 %1034
        %1038 = vset.pattern.permute.xlu0 0
        %1039 = vperm.xlu0 %1038, %v1021
        %v1040 = vpop.permute.xlu0 %1039
        %1043 = vset.pattern.permute.xlu0 0
        %1044 = vperm.xlu0 %1043, %v1022
        %v1045 = vpop.permute.xlu0 %1044
        %1048 = vset.pattern.permute.xlu0 0
        %1049 = vperm.xlu0 %1048, %v1023
        %v1050 = vpop.permute.xlu0 %1049
        %1053 = vset.pattern.permute.xlu0 0
        %1054 = vperm.xlu0 %1053, %v1024
        %v1055 = vpop.permute.xlu0 %1054
        %1058 = vset.pattern.permute.xlu0 0
        %1059 = vperm.xlu0 %1058, %v1025
        %v1060 = vpop.permute.xlu0 %1059
        %1063 = vset.pattern.permute.xlu0 0
        %1064 = vperm.xlu0 %1063, %v1026
        %v1065 = vpop.permute.xlu0 %1064
        %vm1067 = vcmask 785408
        %v1069 = vsel %vm1067, %v1011, 0
        %v1072 = vsel %vm1067, %v1012, 0
        %v1075 = vsel %vm1067, %v1013, 0
        %v1078 = vsel %vm1067, %v1014, 0
        %v1081 = vsel %vm1067, %v1015, 0
        %v1084 = vsel %vm1067, %v1016, 0
        %v1087 = vsel %vm1067, %v1017, 0
        %v1090 = vsel %vm1067, %v1018, 0
        %1092 = vmatpush.msra.mxu0 0.0
        %1093 = vmatpush.msra.mxu0 0.0
        %1094 = vmatpush.msra.mxu0 0.0
        %1095 = vmatpush.msra.mxu0 0.0
        %1096 = vmatpush.msra.mxu0 %v1006
        %1097 = vmatpush.msra.mxu0 %v1005
        %1098 = vmatpush.msra.mxu0 %v1004
        %1099 = vmatpush.msra.mxu0 %v1003
        %1100 = vmatpush.msra.mxu0 %v982
        %1101 = vmatpush.msra.mxu0 %v981
        %1102 = vmatpush.msra.mxu0 %v980
        %1103 = vmatpush.msra.mxu0 %v979
        %1104 = vmatpush.msra.mxu0 %v895
        %1105 = vmatpush.msra.mxu0 %v892
        %1106 = vmatpush.msra.mxu0 %v889
        %1107 = vmatpush.msra.mxu0 %v886
        %1108 = vmatmul.f32.gmra.mxu0 %v1069
        %v1109 = vpop.f32.mrf.mxu0
        %v1110 = vadd.f32 %v1030, %v1109
        %1111 = vmatmul.f32.gmra.mxu0 %v1072
        %v1112 = vpop.f32.mrf.mxu0
        %v1113 = vadd.f32 %v1035, %v1112
        %1114 = vmatmul.f32.gmra.mxu0 %v1075
        %v1115 = vpop.f32.mrf.mxu0
        %v1116 = vadd.f32 %v1040, %v1115
        %1117 = vmatmul.f32.gmra.mxu0 %v1078
        %v1118 = vpop.f32.mrf.mxu0
        %v1119 = vadd.f32 %v1045, %v1118
        %1120 = vmatmul.f32.gmra.mxu0 %v1081
        %v1121 = vpop.f32.mrf.mxu0
        %v1122 = vadd.f32 %v1050, %v1121
        %1123 = vmatmul.f32.gmra.mxu0 %v1084
        %v1124 = vpop.f32.mrf.mxu0
        %v1125 = vadd.f32 %v1055, %v1124
        %1126 = vmatmul.f32.gmra.mxu0 %v1087
        %v1127 = vpop.f32.mrf.mxu0
        %v1128 = vadd.f32 %v1060, %v1127
        %1129 = vmatmul.f32.gmra.mxu0 %v1090
        %v1130 = vpop.f32.mrf.mxu0
        %v1131 = vadd.f32 %v1065, %v1130
        %1132 = vdwg.mxu0
        %v1133 = vmax.f32 %v1110, 0.0
        %v1134 = vmax.f32 %v1113, 0.0
        %v1135 = vmax.f32 %v1116, 0.0
        %v1136 = vmax.f32 %v1119, 0.0
        %v1137 = vmax.f32 %v1122, 0.0
        %v1138 = vmax.f32 %v1125, 0.0
        %v1139 = vmax.f32 %v1128, 0.0
        %v1140 = vmax.f32 %v1131, 0.0
        %1149 = vrot.lane.b32.xlu0 %v1133, 127
        %v1150 = vpop.permute.xlu0 %1149
        %1151 = vrot.lane.b32.xlu0 %v1134, 127
        %v1152 = vpop.permute.xlu0 %1151
        %1153 = vrot.lane.b32.xlu0 %v1135, 127
        %v1154 = vpop.permute.xlu0 %1153
        %1155 = vrot.lane.b32.xlu0 %v1136, 127
        %v1156 = vpop.permute.xlu0 %1155
        %1157 = vrot.lane.b32.xlu0 %v1137, 127
        %v1158 = vpop.permute.xlu0 %1157
        %1159 = vrot.lane.b32.xlu0 %v1138, 127
        %v1160 = vpop.permute.xlu0 %1159
        %1161 = vrot.lane.b32.xlu0 %v1139, 127
        %v1162 = vpop.permute.xlu0 %1161
        %1163 = vrot.lane.b32.xlu0 %v1140, 127
        %v1164 = vpop.permute.xlu0 %1163
        %v1173 = vmax.f32 %v1133, %v1150
        %v1174 = vmax.f32 %v1134, %v1152
        %v1175 = vmax.f32 %v1135, %v1154
        %v1176 = vmax.f32 %v1136, %v1156
        %v1177 = vmax.f32 %v1137, %v1158
        %v1178 = vmax.f32 %v1138, %v1160
        %v1179 = vmax.f32 %v1139, %v1162
        %v1180 = vmax.f32 %v1140, %v1164
        %v1181 = vld [vmem:[%s8] sm:$0xff]
        %v1182 = vld [vmem:[%s8 + $0x8] sm:$0xff]
        %v1183 = vld [vmem:[%s8 + $0x10] sm:$0xff]
        %v1184 = vld [vmem:[%s8 + $0x18] sm:$0xff]
        %v1185 = vld [vmem:[%s8 + $0x20] sm:$0xff]
        %v1186 = vld [vmem:[%s8 + $0x28] sm:$0xff]
        %v1187 = vld [vmem:[%s8 + $0x30] sm:$0xff]
        %v1188 = vld [vmem:[%s8 + $0x38] sm:$0xff]
        %v1189 = vld [vmem:[%s8 + $0x40] sm:$0xff]
        %v1190 = vld [vmem:[%s8 + $0x48] sm:$0xff]
        %v1191 = vld [vmem:[%s8 + $0x50] sm:$0xff]
        %v1192 = vld [vmem:[%s8 + $0x58] sm:$0xff]
        %v1193 = vld [vmem:[%s8 + $0x60] sm:$0xff]
        %v1194 = vld [vmem:[%s8 + $0x68] sm:$0xff]
        %v1195 = vld [vmem:[%s8 + $0x70] sm:$0xff]
        %v1196 = vld [vmem:[%s8 + $0x78] sm:$0x7f]
        %v1198 = vsel %vm575, %v1173, 0
        %v1201 = vsel %vm575, %v1174, 0
        %v1204 = vsel %vm575, %v1175, 0
        %v1207 = vsel %vm575, %v1176, 0
        %v1210 = vsel %vm575, %v1177, 0
        %v1213 = vsel %vm575, %v1178, 0
        %v1216 = vsel %vm575, %v1179, 0
        %v1219 = vsel %vm575, %v1180, 0
        %v1222 = vsel %vm832, %v1196, 0
        %1224 = vmatpush.msra.mxu0 %v1222
        %1225 = vmatpush.msra.mxu0 %v1195
        %1226 = vmatpush.msra.mxu0 %v1194
        %1227 = vmatpush.msra.mxu0 %v1193
        %1228 = vmatpush.msra.mxu0 %v1192
        %1229 = vmatpush.msra.mxu0 %v1191
        %1230 = vmatpush.msra.mxu0 %v1190
        %1231 = vmatpush.msra.mxu0 %v1189
        %1232 = vmatpush.msra.mxu0 %v1188
        %1233 = vmatpush.msra.mxu0 %v1187
        %1234 = vmatpush.msra.mxu0 %v1186
        %1235 = vmatpush.msra.mxu0 %v1185
        %1236 = vmatpush.msra.mxu0 %v1184
        %1237 = vmatpush.msra.mxu0 %v1183
        %1238 = vmatpush.msra.mxu0 %v1182
        %1239 = vmatpush.msra.mxu0 %v1181
        %1240 = vmatmul.f32.gmra.mxu0 %v1198
        %v1241 = vpop.f32.mrf.mxu0
        %v1242 = vadd.f32 0.0, %v1241
        %1243 = vmatmul.f32.gmra.mxu0 %v1201
        %v1244 = vpop.f32.mrf.mxu0
        %v1245 = vadd.f32 0.0, %v1244
        %1246 = vmatmul.f32.gmra.mxu0 %v1204
        %v1247 = vpop.f32.mrf.mxu0
        %v1248 = vadd.f32 0.0, %v1247
        %1249 = vmatmul.f32.gmra.mxu0 %v1207
        %v1250 = vpop.f32.mrf.mxu0
        %v1251 = vadd.f32 0.0, %v1250
        %1252 = vmatmul.f32.gmra.mxu0 %v1210
        %v1253 = vpop.f32.mrf.mxu0
        %v1254 = vadd.f32 0.0, %v1253
        %1255 = vmatmul.f32.gmra.mxu0 %v1213
        %v1256 = vpop.f32.mrf.mxu0
        %v1257 = vadd.f32 0.0, %v1256
        %1258 = vmatmul.f32.gmra.mxu0 %v1216
        %v1259 = vpop.f32.mrf.mxu0
        %v1260 = vadd.f32 0.0, %v1259
        %1261 = vmatmul.f32.gmra.mxu0 %v1219
        %v1262 = vpop.f32.mrf.mxu0
        %v1263 = vadd.f32 0.0, %v1262
        %1264 = vdwg.mxu0
        %1273 = vrot.lane.b32.xlu0 %v1242, 127
        %v1274 = vpop.permute.xlu0 %1273
        %1275 = vrot.lane.b32.xlu0 %v1245, 127
        %v1276 = vpop.permute.xlu0 %1275
        %1277 = vrot.lane.b32.xlu0 %v1248, 127
        %v1278 = vpop.permute.xlu0 %1277
        %1279 = vrot.lane.b32.xlu0 %v1251, 127
        %v1280 = vpop.permute.xlu0 %1279
        %1281 = vrot.lane.b32.xlu0 %v1254, 127
        %v1282 = vpop.permute.xlu0 %1281
        %1283 = vrot.lane.b32.xlu0 %v1257, 127
        %v1284 = vpop.permute.xlu0 %1283
        %1285 = vrot.lane.b32.xlu0 %v1260, 127
        %v1286 = vpop.permute.xlu0 %1285
        %1287 = vrot.lane.b32.xlu0 %v1263, 127
        %v1288 = vpop.permute.xlu0 %1287
        %1297 = vrot.lane.b32.xlu0 %v1242, 126
        %v1298 = vpop.permute.xlu0 %1297
        %1299 = vrot.lane.b32.xlu0 %v1245, 126
        %v1300 = vpop.permute.xlu0 %1299
        %1301 = vrot.lane.b32.xlu0 %v1248, 126
        %v1302 = vpop.permute.xlu0 %1301
        %1303 = vrot.lane.b32.xlu0 %v1251, 126
        %v1304 = vpop.permute.xlu0 %1303
        %1305 = vrot.lane.b32.xlu0 %v1254, 126
        %v1306 = vpop.permute.xlu0 %1305
        %1307 = vrot.lane.b32.xlu0 %v1257, 126
        %v1308 = vpop.permute.xlu0 %1307
        %1309 = vrot.lane.b32.xlu0 %v1260, 126
        %v1310 = vpop.permute.xlu0 %1309
        %1311 = vrot.lane.b32.xlu0 %v1263, 126
        %v1312 = vpop.permute.xlu0 %1311
        %v1321 = vld [vmem:[%s5] sm:$0xff]
        %v1322 = vld [vmem:[%s5 + $0x8] sm:$0xff]
        %v1323 = vld [vmem:[%s5 + $0x10] sm:$0xff]
        %v1324 = vld [vmem:[%s5 + $0x18] sm:$0xff]
        %v1325 = vld [vmem:[%s5 + $0x20] sm:$0xff]
        %v1326 = vld [vmem:[%s5 + $0x28] sm:$0xff]
        %v1327 = vld [vmem:[%s5 + $0x30] sm:$0xff]
        %v1328 = vld [vmem:[%s5 + $0x38] sm:$0xff]
        %v1329 = vld [vmem:[%s5 + $0x40] sm:$0xff]
        %v1330 = vld [vmem:[%s5 + $0x48] sm:$0xff]
        %v1331 = vld [vmem:[%s5 + $0x50] sm:$0xff]
        %v1332 = vld [vmem:[%s5 + $0x58] sm:$0xff]
        %v1333 = vld [vmem:[%s5 + $0x60] sm:$0xff]
        %v1334 = vld [vmem:[%s5 + $0x68] sm:$0xff]
        %v1335 = vld [vmem:[%s5 + $0x70] sm:$0xff]
        %v1336 = vld [vmem:[%s5 + $0x78] sm:$0xff]
        %v1337 = vld [vmem:[%s5 + $0x80] sm:$0xff]
        %v1338 = vld [vmem:[%s5 + $0x88] sm:$0xff]
        %v1339 = vld [vmem:[%s5 + $0x90] sm:$0xff]
        %v1340 = vld [vmem:[%s5 + $0x98] sm:$0xff]
        %v1341 = vld [vmem:[%s5 + $0xa0] sm:$0xff]
        %v1342 = vld [vmem:[%s5 + $0xa8] sm:$0xff]
        %v1343 = vld [vmem:[%s5 + $0xb0] sm:$0xff]
        %v1344 = vld [vmem:[%s5 + $0xb8] sm:$0xff]
        %v1345 = vld [vmem:[%s5 + $0xc0] sm:$0xff]
        %v1346 = vld [vmem:[%s5 + $0xc8] sm:$0xff]
        %v1347 = vld [vmem:[%s5 + $0xd0] sm:$0xff]
        %v1348 = vld [vmem:[%s5 + $0xd8] sm:$0xff]
        %v1349 = vld [vmem:[%s5 + $0xe0] sm:$0xff]
        %v1350 = vld [vmem:[%s5 + $0xe8] sm:$0xff]
        %v1351 = vld [vmem:[%s5 + $0xf0] sm:$0xff]
        %v1352 = vld [vmem:[%s5 + $0xf8] sm:$0xff]
        %v1353 = vld [vmem:[%s6] sm:$0xff]
        %v1354 = vld [vmem:[%s6 + $0x8] sm:$0xff]
        %v1355 = vld [vmem:[%s6 + $0x10] sm:$0xff]
        %v1356 = vld [vmem:[%s6 + $0x18] sm:$0xff]
        %v1357 = vld [vmem:[%s6 + $0x20] sm:$0xff]
        %v1358 = vld [vmem:[%s6 + $0x28] sm:$0xff]
        %v1359 = vld [vmem:[%s6 + $0x30] sm:$0xff]
        %v1360 = vld [vmem:[%s6 + $0x38] sm:$0xff]
        %v1361 = vld [vmem:[%s6 + $0x40] sm:$0xff]
        %v1362 = vld [vmem:[%s6 + $0x48] sm:$0xff]
        %v1363 = vld [vmem:[%s6 + $0x50] sm:$0xff]
        %v1364 = vld [vmem:[%s6 + $0x58] sm:$0xff]
        %v1365 = vld [vmem:[%s6 + $0x60] sm:$0xff]
        %v1366 = vld [vmem:[%s6 + $0x68] sm:$0xff]
        %v1367 = vld [vmem:[%s6 + $0x70] sm:$0xff]
        %v1368 = vld [vmem:[%s6 + $0x78] sm:$0xff]
        %1370 = vset.pattern.permute.xlu0 0
        %1371 = vperm.xlu0 %1370, %v1353
        %v1372 = vpop.permute.xlu0 %1371
        %1375 = vset.pattern.permute.xlu0 0
        %1376 = vperm.xlu0 %1375, %v1354
        %v1377 = vpop.permute.xlu0 %1376
        %1380 = vset.pattern.permute.xlu0 0
        %1381 = vperm.xlu0 %1380, %v1355
        %v1382 = vpop.permute.xlu0 %1381
        %1385 = vset.pattern.permute.xlu0 0
        %1386 = vperm.xlu0 %1385, %v1356
        %v1387 = vpop.permute.xlu0 %1386
        %1390 = vset.pattern.permute.xlu0 0
        %1391 = vperm.xlu0 %1390, %v1357
        %v1392 = vpop.permute.xlu0 %1391
        %1395 = vset.pattern.permute.xlu0 0
        %1396 = vperm.xlu0 %1395, %v1358
        %v1397 = vpop.permute.xlu0 %1396
        %1400 = vset.pattern.permute.xlu0 0
        %1401 = vperm.xlu0 %1400, %v1359
        %v1402 = vpop.permute.xlu0 %1401
        %1405 = vset.pattern.permute.xlu0 0
        %1406 = vperm.xlu0 %1405, %v1360
        %v1407 = vpop.permute.xlu0 %1406
        %1410 = vset.pattern.permute.xlu0 0
        %1411 = vperm.xlu0 %1410, %v1361
        %v1412 = vpop.permute.xlu0 %1411
        %1415 = vset.pattern.permute.xlu0 0
        %1416 = vperm.xlu0 %1415, %v1362
        %v1417 = vpop.permute.xlu0 %1416
        %1420 = vset.pattern.permute.xlu0 0
        %1421 = vperm.xlu0 %1420, %v1363
        %v1422 = vpop.permute.xlu0 %1421
        %1425 = vset.pattern.permute.xlu0 0
        %1426 = vperm.xlu0 %1425, %v1364
        %v1427 = vpop.permute.xlu0 %1426
        %1430 = vset.pattern.permute.xlu0 0
        %1431 = vperm.xlu0 %1430, %v1365
        %v1432 = vpop.permute.xlu0 %1431
        %1435 = vset.pattern.permute.xlu0 0
        %1436 = vperm.xlu0 %1435, %v1366
        %v1437 = vpop.permute.xlu0 %1436
        %1440 = vset.pattern.permute.xlu0 0
        %1441 = vperm.xlu0 %1440, %v1367
        %v1442 = vpop.permute.xlu0 %1441
        %1445 = vset.pattern.permute.xlu0 0
        %1446 = vperm.xlu0 %1445, %v1368
        %v1447 = vpop.permute.xlu0 %1446
        %vm1449 = vcmask 523264
        %v1451 = vsel %vm1449, %v1322, 0
        %v1454 = vsel %vm1449, %v1324, 0
        %v1457 = vsel %vm1449, %v1326, 0
        %v1460 = vsel %vm1449, %v1328, 0
        %v1463 = vsel %vm1449, %v1330, 0
        %v1466 = vsel %vm1449, %v1332, 0
        %v1469 = vsel %vm1449, %v1334, 0
        %v1472 = vsel %vm1449, %v1336, 0
        %v1475 = vsel %vm1449, %v1338, 0
        %v1478 = vsel %vm1449, %v1340, 0
        %v1481 = vsel %vm1449, %v1342, 0
        %v1484 = vsel %vm1449, %v1344, 0
        %v1487 = vsel %vm1449, %v1346, 0
        %v1490 = vsel %vm1449, %v1348, 0
        %v1493 = vsel %vm1449, %v1350, 0
        %v1496 = vsel %vm1449, %v1352, 0
        %1498 = vmatpush.msra.mxu0 %v1288
        %1499 = vmatpush.msra.mxu0 %v1286
        %1500 = vmatpush.msra.mxu0 %v1284
        %1501 = vmatpush.msra.mxu0 %v1282
        %1502 = vmatpush.msra.mxu0 %v1280
        %1503 = vmatpush.msra.mxu0 %v1278
        %1504 = vmatpush.msra.mxu0 %v1276
        %1505 = vmatpush.msra.mxu0 %v1274
        %1506 = vmatpush.msra.mxu0 %v1263
        %1507 = vmatpush.msra.mxu0 %v1260
        %1508 = vmatpush.msra.mxu0 %v1257
        %1509 = vmatpush.msra.mxu0 %v1254
        %1510 = vmatpush.msra.mxu0 %v1251
        %1511 = vmatpush.msra.mxu0 %v1248
        %1512 = vmatpush.msra.mxu0 %v1245
        %1513 = vmatpush.msra.mxu0 %v1242
        %1514 = vmatmul.f32.gmra.mxu0 %v1321
        %v1515 = vpop.f32.mrf.mxu0
        %v1516 = vadd.f32 %v1372, %v1515
        %1517 = vmatmul.f32.gmra.mxu0 %v1323
        %v1518 = vpop.f32.mrf.mxu0
        %v1519 = vadd.f32 %v1377, %v1518
        %1520 = vmatmul.f32.gmra.mxu0 %v1325
        %v1521 = vpop.f32.mrf.mxu0
        %v1522 = vadd.f32 %v1382, %v1521
        %1523 = vmatmul.f32.gmra.mxu0 %v1327
        %v1524 = vpop.f32.mrf.mxu0
        %v1525 = vadd.f32 %v1387, %v1524
        %1526 = vmatmul.f32.gmra.mxu0 %v1329
        %v1527 = vpop.f32.mrf.mxu0
        %v1528 = vadd.f32 %v1392, %v1527
        %1529 = vmatmul.f32.gmra.mxu0 %v1331
        %v1530 = vpop.f32.mrf.mxu0
        %v1531 = vadd.f32 %v1397, %v1530
        %1532 = vmatmul.f32.gmra.mxu0 %v1333
        %v1533 = vpop.f32.mrf.mxu0
        %v1534 = vadd.f32 %v1402, %v1533
        %1535 = vmatmul.f32.gmra.mxu0 %v1335
        %v1536 = vpop.f32.mrf.mxu0
        %v1537 = vadd.f32 %v1407, %v1536
        %1538 = vmatmul.f32.gmra.mxu0 %v1337
        %v1539 = vpop.f32.mrf.mxu0
        %v1540 = vadd.f32 %v1412, %v1539
        %1541 = vmatmul.f32.gmra.mxu0 %v1339
        %v1542 = vpop.f32.mrf.mxu0
        %v1543 = vadd.f32 %v1417, %v1542
        %1544 = vmatmul.f32.gmra.mxu0 %v1341
        %v1545 = vpop.f32.mrf.mxu0
        %v1546 = vadd.f32 %v1422, %v1545
        %1547 = vmatmul.f32.gmra.mxu0 %v1343
        %v1548 = vpop.f32.mrf.mxu0
        %v1549 = vadd.f32 %v1427, %v1548
        %1550 = vmatmul.f32.gmra.mxu0 %v1345
        %v1551 = vpop.f32.mrf.mxu0
        %v1552 = vadd.f32 %v1432, %v1551
        %1553 = vmatmul.f32.gmra.mxu0 %v1347
        %v1554 = vpop.f32.mrf.mxu0
        %v1555 = vadd.f32 %v1437, %v1554
        %1556 = vmatmul.f32.gmra.mxu0 %v1349
        %v1557 = vpop.f32.mrf.mxu0
        %v1558 = vadd.f32 %v1442, %v1557
        %1559 = vmatmul.f32.gmra.mxu0 %v1351
        %v1560 = vpop.f32.mrf.mxu0
        %v1561 = vadd.f32 %v1447, %v1560
        %1562 = vdwg.mxu0
        %1563 = vmatpush.msra.mxu0 0.0
        %1564 = vmatpush.msra.mxu0 0.0
        %1565 = vmatpush.msra.mxu0 0.0
        %1566 = vmatpush.msra.mxu0 0.0
        %1567 = vmatpush.msra.mxu0 0.0
        %1568 = vmatpush.msra.mxu0 0.0
        %1569 = vmatpush.msra.mxu0 0.0
        %1570 = vmatpush.msra.mxu0 0.0
        %1571 = vmatpush.msra.mxu0 %v1312
        %1572 = vmatpush.msra.mxu0 %v1310
        %1573 = vmatpush.msra.mxu0 %v1308
        %1574 = vmatpush.msra.mxu0 %v1306
        %1575 = vmatpush.msra.mxu0 %v1304
        %1576 = vmatpush.msra.mxu0 %v1302
        %1577 = vmatpush.msra.mxu0 %v1300
        %1578 = vmatpush.msra.mxu0 %v1298
        %1579 = vmatmul.f32.gmra.mxu0 %v1451
        %v1580 = vpop.f32.mrf.mxu0
        %v1581 = vadd.f32 %v1516, %v1580
        %1582 = vmatmul.f32.gmra.mxu0 %v1454
        %v1583 = vpop.f32.mrf.mxu0
        %v1584 = vadd.f32 %v1519, %v1583
        %1585 = vmatmul.f32.gmra.mxu0 %v1457
        %v1586 = vpop.f32.mrf.mxu0
        %v1587 = vadd.f32 %v1522, %v1586
        %1588 = vmatmul.f32.gmra.mxu0 %v1460
        %v1589 = vpop.f32.mrf.mxu0
        %v1590 = vadd.f32 %v1525, %v1589
        %1591 = vmatmul.f32.gmra.mxu0 %v1463
        %v1592 = vpop.f32.mrf.mxu0
        %v1593 = vadd.f32 %v1528, %v1592
        %1594 = vmatmul.f32.gmra.mxu0 %v1466
        %v1595 = vpop.f32.mrf.mxu0
        %v1596 = vadd.f32 %v1531, %v1595
        %1597 = vmatmul.f32.gmra.mxu0 %v1469
        %v1598 = vpop.f32.mrf.mxu0
        %v1599 = vadd.f32 %v1534, %v1598
        %1600 = vmatmul.f32.gmra.mxu0 %v1472
        %v1601 = vpop.f32.mrf.mxu0
        %v1602 = vadd.f32 %v1537, %v1601
        %1603 = vmatmul.f32.gmra.mxu0 %v1475
        %v1604 = vpop.f32.mrf.mxu0
        %v1605 = vadd.f32 %v1540, %v1604
        %1606 = vmatmul.f32.gmra.mxu0 %v1478
        %v1607 = vpop.f32.mrf.mxu0
        %v1608 = vadd.f32 %v1543, %v1607
        %1609 = vmatmul.f32.gmra.mxu0 %v1481
        %v1610 = vpop.f32.mrf.mxu0
        %v1611 = vadd.f32 %v1546, %v1610
        %1612 = vmatmul.f32.gmra.mxu0 %v1484
        %v1613 = vpop.f32.mrf.mxu0
        %v1614 = vadd.f32 %v1549, %v1613
        %1615 = vmatmul.f32.gmra.mxu0 %v1487
        %v1616 = vpop.f32.mrf.mxu0
        %v1617 = vadd.f32 %v1552, %v1616
        %1618 = vmatmul.f32.gmra.mxu0 %v1490
        %v1619 = vpop.f32.mrf.mxu0
        %v1620 = vadd.f32 %v1555, %v1619
        %1621 = vmatmul.f32.gmra.mxu0 %v1493
        %v1622 = vpop.f32.mrf.mxu0
        %v1623 = vadd.f32 %v1558, %v1622
        %1624 = vmatmul.f32.gmra.mxu0 %v1496
        %v1625 = vpop.f32.mrf.mxu0
        %v1626 = vadd.f32 %v1561, %v1625
        %1627 = vdwg.mxu0
        %v1628 = vmax.f32 %v1581, 0.0
        %v1629 = vmax.f32 %v1584, 0.0
        %v1630 = vmax.f32 %v1587, 0.0
        %v1631 = vmax.f32 %v1590, 0.0
        %v1632 = vmax.f32 %v1593, 0.0
        %v1633 = vmax.f32 %v1596, 0.0
        %v1634 = vmax.f32 %v1599, 0.0
        %v1635 = vmax.f32 %v1602, 0.0
        %v1636 = vmax.f32 %v1605, 0.0
        %v1637 = vmax.f32 %v1608, 0.0
        %v1638 = vmax.f32 %v1611, 0.0
        %v1639 = vmax.f32 %v1614, 0.0
        %v1640 = vmax.f32 %v1617, 0.0
        %v1641 = vmax.f32 %v1620, 0.0
        %v1642 = vmax.f32 %v1623, 0.0
        %v1643 = vmax.f32 %v1626, 0.0
        %1660 = vrot.lane.b32.xlu0 %v1628, 127
        %v1661 = vpop.permute.xlu0 %1660
        %1662 = vrot.lane.b32.xlu0 %v1629, 127
        %v1663 = vpop.permute.xlu0 %1662
        %1664 = vrot.lane.b32.xlu0 %v1630, 127
        %v1665 = vpop.permute.xlu0 %1664
        %1666 = vrot.lane.b32.xlu0 %v1631, 127
        %v1667 = vpop.permute.xlu0 %1666
        %1668 = vrot.lane.b32.xlu0 %v1632, 127
        %v1669 = vpop.permute.xlu0 %1668
        %1670 = vrot.lane.b32.xlu0 %v1633, 127
        %v1671 = vpop.permute.xlu0 %1670
        %1672 = vrot.lane.b32.xlu0 %v1634, 127
        %v1673 = vpop.permute.xlu0 %1672
        %1674 = vrot.lane.b32.xlu0 %v1635, 127
        %v1675 = vpop.permute.xlu0 %1674
        %1676 = vrot.lane.b32.xlu0 %v1636, 127
        %v1677 = vpop.permute.xlu0 %1676
        %1678 = vrot.lane.b32.xlu0 %v1637, 127
        %v1679 = vpop.permute.xlu0 %1678
        %1680 = vrot.lane.b32.xlu0 %v1638, 127
        %v1681 = vpop.permute.xlu0 %1680
        %1682 = vrot.lane.b32.xlu0 %v1639, 127
        %v1683 = vpop.permute.xlu0 %1682
        %1684 = vrot.lane.b32.xlu0 %v1640, 127
        %v1685 = vpop.permute.xlu0 %1684
        %1686 = vrot.lane.b32.xlu0 %v1641, 127
        %v1687 = vpop.permute.xlu0 %1686
        %1688 = vrot.lane.b32.xlu0 %v1642, 127
        %v1689 = vpop.permute.xlu0 %1688
        %1690 = vrot.lane.b32.xlu0 %v1643, 127
        %v1691 = vpop.permute.xlu0 %1690
        %v1708 = vmax.f32 %v1628, %v1661
        %v1709 = vmax.f32 %v1629, %v1663
        %v1710 = vmax.f32 %v1630, %v1665
        %v1711 = vmax.f32 %v1631, %v1667
        %v1712 = vmax.f32 %v1632, %v1669
        %v1713 = vmax.f32 %v1633, %v1671
        %v1714 = vmax.f32 %v1634, %v1673
        %v1715 = vmax.f32 %v1635, %v1675
        %v1716 = vmax.f32 %v1636, %v1677
        %v1717 = vmax.f32 %v1637, %v1679
        %v1718 = vmax.f32 %v1638, %v1681
        %v1719 = vmax.f32 %v1639, %v1683
        %v1720 = vmax.f32 %v1640, %v1685
        %v1721 = vmax.f32 %v1641, %v1687
        %v1722 = vmax.f32 %v1642, %v1689
        %v1723 = vmax.f32 %v1643, %v1691
        %v1724 = vld [vmem:[%s9] sm:$0xff]
        %v1725 = vld [vmem:[%s9 + $0x8] sm:$0xff]
        %v1726 = vld [vmem:[%s9 + $0x10] sm:$0xff]
        %v1727 = vld [vmem:[%s9 + $0x18] sm:$0xff]
        %v1728 = vld [vmem:[%s9 + $0x20] sm:$0xff]
        %v1729 = vld [vmem:[%s9 + $0x28] sm:$0xff]
        %v1730 = vld [vmem:[%s9 + $0x30] sm:$0xff]
        %v1731 = vld [vmem:[%s9 + $0x38] sm:$0x7f]
        %vm1732 = vcmask 515072
        %v1734 = vsel %vm1732, %v1708, 0
        %v1737 = vsel %vm1732, %v1709, 0
        %v1740 = vsel %vm1732, %v1710, 0
        %v1743 = vsel %vm1732, %v1711, 0
        %v1746 = vsel %vm1732, %v1712, 0
        %v1749 = vsel %vm1732, %v1713, 0
        %v1752 = vsel %vm1732, %v1714, 0
        %v1755 = vsel %vm1732, %v1715, 0
        %v1758 = vsel %vm1732, %v1716, 0
        %v1761 = vsel %vm1732, %v1717, 0
        %v1764 = vsel %vm1732, %v1718, 0
        %v1767 = vsel %vm1732, %v1719, 0
        %v1770 = vsel %vm1732, %v1720, 0
        %v1773 = vsel %vm1732, %v1721, 0
        %v1776 = vsel %vm1732, %v1722, 0
        %v1779 = vsel %vm1732, %v1723, 0
        %v1782 = vsel %vm832, %v1731, 0
        %1784 = vmatpush.msra.mxu0 0.0
        %1785 = vmatpush.msra.mxu0 0.0
        %1786 = vmatpush.msra.mxu0 0.0
        %1787 = vmatpush.msra.mxu0 0.0
        %1788 = vmatpush.msra.mxu0 0.0
        %1789 = vmatpush.msra.mxu0 0.0
        %1790 = vmatpush.msra.mxu0 0.0
        %1791 = vmatpush.msra.mxu0 0.0
        %1792 = vmatpush.msra.mxu0 %v1782
        %1793 = vmatpush.msra.mxu0 %v1730
        %1794 = vmatpush.msra.mxu0 %v1729
        %1795 = vmatpush.msra.mxu0 %v1728
        %1796 = vmatpush.msra.mxu0 %v1727
        %1797 = vmatpush.msra.mxu0 %v1726
        %1798 = vmatpush.msra.mxu0 %v1725
        %1799 = vmatpush.msra.mxu0 %v1724
        %1800 = vmatmul.f32.gmra.mxu0 %v1734
        %v1801 = vpop.f32.mrf.mxu0
        %v1802 = vadd.f32 0.0, %v1801
        %1803 = vmatmul.f32.gmra.mxu0 %v1737
        %v1804 = vpop.f32.mrf.mxu0
        %v1805 = vadd.f32 0.0, %v1804
        %1806 = vmatmul.f32.gmra.mxu0 %v1740
        %v1807 = vpop.f32.mrf.mxu0
        %v1808 = vadd.f32 0.0, %v1807
        %1809 = vmatmul.f32.gmra.mxu0 %v1743
        %v1810 = vpop.f32.mrf.mxu0
        %v1811 = vadd.f32 0.0, %v1810
        %1812 = vmatmul.f32.gmra.mxu0 %v1746
        %v1813 = vpop.f32.mrf.mxu0
        %v1814 = vadd.f32 0.0, %v1813
        %1815 = vmatmul.f32.gmra.mxu0 %v1749
        %v1816 = vpop.f32.mrf.mxu0
        %v1817 = vadd.f32 0.0, %v1816
        %1818 = vmatmul.f32.gmra.mxu0 %v1752
        %v1819 = vpop.f32.mrf.mxu0
        %v1820 = vadd.f32 0.0, %v1819
        %1821 = vmatmul.f32.gmra.mxu0 %v1755
        %v1822 = vpop.f32.mrf.mxu0
        %v1823 = vadd.f32 0.0, %v1822
        %1824 = vmatmul.f32.gmra.mxu0 %v1758
        %v1825 = vpop.f32.mrf.mxu0
        %v1826 = vadd.f32 0.0, %v1825
        %1827 = vmatmul.f32.gmra.mxu0 %v1761
        %v1828 = vpop.f32.mrf.mxu0
        %v1829 = vadd.f32 0.0, %v1828
        %1830 = vmatmul.f32.gmra.mxu0 %v1764
        %v1831 = vpop.f32.mrf.mxu0
        %v1832 = vadd.f32 0.0, %v1831
        %1833 = vmatmul.f32.gmra.mxu0 %v1767
        %v1834 = vpop.f32.mrf.mxu0
        %v1835 = vadd.f32 0.0, %v1834
        %1836 = vmatmul.f32.gmra.mxu0 %v1770
        %v1837 = vpop.f32.mrf.mxu0
        %v1838 = vadd.f32 0.0, %v1837
        %1839 = vmatmul.f32.gmra.mxu0 %v1773
        %v1840 = vpop.f32.mrf.mxu0
        %v1841 = vadd.f32 0.0, %v1840
        %1842 = vmatmul.f32.gmra.mxu0 %v1776
        %v1843 = vpop.f32.mrf.mxu0
        %v1844 = vadd.f32 0.0, %v1843
        %1845 = vmatmul.f32.gmra.mxu0 %v1779
        %v1846 = vpop.f32.mrf.mxu0
        %v1847 = vadd.f32 0.0, %v1846
        %1848 = vdwg.mxu0
        %v1849 = vld [vmem:[%s10] sm:$0xff]
        %v1850 = vld [vmem:[%s10 + $0x8] sm:$0xff]
        %v1851 = vld [vmem:[%s10 + $0x10] sm:$0xff]
        %v1852 = vld [vmem:[%s10 + $0x18] sm:$0xff]
        %v1853 = vld [vmem:[%s10 + $0x20] sm:$0xff]
        %v1854 = vld [vmem:[%s10 + $0x28] sm:$0xff]
        %v1855 = vld [vmem:[%s10 + $0x30] sm:$0xff]
        %v1856 = vld [vmem:[%s10 + $0x38] sm:$0xff]
        %1858 = vrot.lane.b32.xlu0 %v1805, 127
        %v1859 = vpop.permute.xlu0 %1858
        %vm1860 = vcmask 261120
        %v1861 = vsel %vm1860, %v1859, 0
        %1863 = vmatpush.msra.mxu0 0.0
        %1864 = vmatpush.msra.mxu0 0.0
        %1865 = vmatpush.msra.mxu0 0.0
        %1866 = vmatpush.msra.mxu0 0.0
        %1867 = vmatpush.msra.mxu0 0.0
        %1868 = vmatpush.msra.mxu0 0.0
        %1869 = vmatpush.msra.mxu0 0.0
        %1870 = vmatpush.msra.mxu0 0.0
        %1871 = vmatpush.msra.mxu0 0.0
        %1872 = vmatpush.msra.mxu0 0.0
        %1873 = vmatpush.msra.mxu0 0.0
        %1874 = vmatpush.msra.mxu0 0.0
        %1875 = vmatpush.msra.mxu0 %v1856
        %1876 = vmatpush.msra.mxu0 %v1855
        %1877 = vmatpush.msra.mxu0 %v1854
        %1878 = vmatpush.msra.mxu0 %v1853
        %1879 = vmatmul.f32.gmra.mxu0 %v1861
        %v1880 = vpop.f32.mrf.mxu0
        %v1881 = vadd.f32 0.0, %v1880
        %1882 = vdwg.mxu0
        %v1883 = vld [vmem:[%s10 + $0x40] sm:$0xff]
        %v1884 = vld [vmem:[%s10 + $0x48] sm:$0xff]
        %v1885 = vld [vmem:[%s10 + $0x50] sm:$0xff]
        %v1886 = vld [vmem:[%s10 + $0x58] sm:$0xff]
        %v1887 = vld [vmem:[%s10 + $0x60] sm:$0xff]
        %v1888 = vld [vmem:[%s10 + $0x68] sm:$0xff]
        %v1889 = vld [vmem:[%s10 + $0x70] sm:$0xff]
        %v1890 = vld [vmem:[%s10 + $0x78] sm:$0xff]
        %1892 = vrot.lane.b32.xlu0 %v1811, 127
        %v1893 = vpop.permute.xlu0 %1892
        %v1894 = vsel %vm1860, %v1893, 0
        %1896 = vmatpush.msra.mxu0 0.0
        %1897 = vmatpush.msra.mxu0 0.0
        %1898 = vmatpush.msra.mxu0 0.0
        %1899 = vmatpush.msra.mxu0 0.0
        %1900 = vmatpush.msra.mxu0 0.0
        %1901 = vmatpush.msra.mxu0 0.0
        %1902 = vmatpush.msra.mxu0 0.0
        %1903 = vmatpush.msra.mxu0 0.0
        %1904 = vmatpush.msra.mxu0 0.0
        %1905 = vmatpush.msra.mxu0 0.0
        %1906 = vmatpush.msra.mxu0 0.0
        %1907 = vmatpush.msra.mxu0 0.0
        %1908 = vmatpush.msra.mxu0 %v1890
        %1909 = vmatpush.msra.mxu0 %v1889
        %1910 = vmatpush.msra.mxu0 %v1888
        %1911 = vmatpush.msra.mxu0 %v1887
        %1912 = vmatmul.f32.gmra.mxu0 %v1894
        %v1913 = vpop.f32.mrf.mxu0
        %v1914 = vadd.f32 0.0, %v1913
        %1915 = vdwg.mxu0
        %v1916 = vld [vmem:[%s10 + $0x80] sm:$0xff]
        %v1917 = vld [vmem:[%s10 + $0x88] sm:$0xff]
        %v1918 = vld [vmem:[%s10 + $0x90] sm:$0xff]
        %v1919 = vld [vmem:[%s10 + $0x98] sm:$0xff]
        %v1920 = vld [vmem:[%s10 + $0xa0] sm:$0xff]
        %v1921 = vld [vmem:[%s10 + $0xa8] sm:$0xff]
        %v1922 = vld [vmem:[%s10 + $0xb0] sm:$0xff]
        %v1923 = vld [vmem:[%s10 + $0xb8] sm:$0xff]
        %1925 = vrot.lane.b32.xlu0 %v1817, 127
        %v1926 = vpop.permute.xlu0 %1925
        %v1927 = vsel %vm1860, %v1926, 0
        %1929 = vmatpush.msra.mxu0 0.0
        %1930 = vmatpush.msra.mxu0 0.0
        %1931 = vmatpush.msra.mxu0 0.0
        %1932 = vmatpush.msra.mxu0 0.0
        %1933 = vmatpush.msra.mxu0 0.0
        %1934 = vmatpush.msra.mxu0 0.0
        %1935 = vmatpush.msra.mxu0 0.0
        %1936 = vmatpush.msra.mxu0 0.0
        %1937 = vmatpush.msra.mxu0 0.0
        %1938 = vmatpush.msra.mxu0 0.0
        %1939 = vmatpush.msra.mxu0 0.0
        %1940 = vmatpush.msra.mxu0 0.0
        %1941 = vmatpush.msra.mxu0 %v1923
        %1942 = vmatpush.msra.mxu0 %v1922
        %1943 = vmatpush.msra.mxu0 %v1921
        %1944 = vmatpush.msra.mxu0 %v1920
        %1945 = vmatmul.f32.gmra.mxu0 %v1927
        %v1946 = vpop.f32.mrf.mxu0
        %v1947 = vadd.f32 0.0, %v1946
        %1948 = vdwg.mxu0
        %v1949 = vld [vmem:[%s10 + $0xc0] sm:$0xff]
        %v1950 = vld [vmem:[%s10 + $0xc8] sm:$0xff]
        %v1951 = vld [vmem:[%s10 + $0xd0] sm:$0xff]
        %v1952 = vld [vmem:[%s10 + $0xd8] sm:$0xff]
        %v1953 = vld [vmem:[%s10 + $0xe0] sm:$0xff]
        %v1954 = vld [vmem:[%s10 + $0xe8] sm:$0xff]
        %v1955 = vld [vmem:[%s10 + $0xf0] sm:$0xff]
        %v1956 = vld [vmem:[%s10 + $0xf8] sm:$0xff]
        %1958 = vrot.lane.b32.xlu0 %v1823, 127
        %v1959 = vpop.permute.xlu0 %1958
        %v1960 = vsel %vm1860, %v1959, 0
        %1962 = vmatpush.msra.mxu0 0.0
        %1963 = vmatpush.msra.mxu0 0.0
        %1964 = vmatpush.msra.mxu0 0.0
        %1965 = vmatpush.msra.mxu0 0.0
        %1966 = vmatpush.msra.mxu0 0.0
        %1967 = vmatpush.msra.mxu0 0.0
        %1968 = vmatpush.msra.mxu0 0.0
        %1969 = vmatpush.msra.mxu0 0.0
        %1970 = vmatpush.msra.mxu0 0.0
        %1971 = vmatpush.msra.mxu0 0.0
        %1972 = vmatpush.msra.mxu0 0.0
        %1973 = vmatpush.msra.mxu0 0.0
        %1974 = vmatpush.msra.mxu0 %v1956
        %1975 = vmatpush.msra.mxu0 %v1955
        %1976 = vmatpush.msra.mxu0 %v1954
        %1977 = vmatpush.msra.mxu0 %v1953
        %1978 = vmatmul.f32.gmra.mxu0 %v1960
        %v1979 = vpop.f32.mrf.mxu0
        %v1980 = vadd.f32 0.0, %v1979
        %1981 = vdwg.mxu0
        %v1982 = vld [vmem:[%s10 + $0x100] sm:$0xff]
        %v1983 = vld [vmem:[%s10 + $0x108] sm:$0xff]
        %v1984 = vld [vmem:[%s10 + $0x110] sm:$0xff]
        %v1985 = vld [vmem:[%s10 + $0x118] sm:$0xff]
        %v1986 = vld [vmem:[%s10 + $0x120] sm:$0xff]
        %v1987 = vld [vmem:[%s10 + $0x128] sm:$0xff]
        %v1988 = vld [vmem:[%s10 + $0x130] sm:$0xff]
        %v1989 = vld [vmem:[%s10 + $0x138] sm:$0xff]
        %1991 = vrot.lane.b32.xlu0 %v1829, 127
        %v1992 = vpop.permute.xlu0 %1991
        %v1993 = vsel %vm1860, %v1992, 0
        %1995 = vmatpush.msra.mxu0 0.0
        %1996 = vmatpush.msra.mxu0 0.0
        %1997 = vmatpush.msra.mxu0 0.0
        %1998 = vmatpush.msra.mxu0 0.0
        %1999 = vmatpush.msra.mxu0 0.0
        %2000 = vmatpush.msra.mxu0 0.0
        %2001 = vmatpush.msra.mxu0 0.0
        %2002 = vmatpush.msra.mxu0 0.0
        %2003 = vmatpush.msra.mxu0 0.0
        %2004 = vmatpush.msra.mxu0 0.0
        %2005 = vmatpush.msra.mxu0 0.0
        %2006 = vmatpush.msra.mxu0 0.0
        %2007 = vmatpush.msra.mxu0 %v1989
        %2008 = vmatpush.msra.mxu0 %v1988
        %2009 = vmatpush.msra.mxu0 %v1987
        %2010 = vmatpush.msra.mxu0 %v1986
        %2011 = vmatmul.f32.gmra.mxu0 %v1993
        %v2012 = vpop.f32.mrf.mxu0
        %v2013 = vadd.f32 0.0, %v2012
        %2014 = vdwg.mxu0
        %v2015 = vld [vmem:[%s10 + $0x140] sm:$0xff]
        %v2016 = vld [vmem:[%s10 + $0x148] sm:$0xff]
        %v2017 = vld [vmem:[%s10 + $0x150] sm:$0xff]
        %v2018 = vld [vmem:[%s10 + $0x158] sm:$0xff]
        %v2019 = vld [vmem:[%s10 + $0x160] sm:$0xff]
        %v2020 = vld [vmem:[%s10 + $0x168] sm:$0xff]
        %v2021 = vld [vmem:[%s10 + $0x170] sm:$0xff]
        %v2022 = vld [vmem:[%s10 + $0x178] sm:$0xff]
        %2024 = vrot.lane.b32.xlu0 %v1835, 127
        %v2025 = vpop.permute.xlu0 %2024
        %v2026 = vsel %vm1860, %v2025, 0
        %2028 = vmatpush.msra.mxu0 0.0
        %2029 = vmatpush.msra.mxu0 0.0
        %2030 = vmatpush.msra.mxu0 0.0
        %2031 = vmatpush.msra.mxu0 0.0
        %2032 = vmatpush.msra.mxu0 0.0
        %2033 = vmatpush.msra.mxu0 0.0
        %2034 = vmatpush.msra.mxu0 0.0
        %2035 = vmatpush.msra.mxu0 0.0
        %2036 = vmatpush.msra.mxu0 0.0
        %2037 = vmatpush.msra.mxu0 0.0
        %2038 = vmatpush.msra.mxu0 0.0
        %2039 = vmatpush.msra.mxu0 0.0
        %2040 = vmatpush.msra.mxu0 %v2022
        %2041 = vmatpush.msra.mxu0 %v2021
        %2042 = vmatpush.msra.mxu0 %v2020
        %2043 = vmatpush.msra.mxu0 %v2019
        %2044 = vmatmul.f32.gmra.mxu0 %v2026
        %v2045 = vpop.f32.mrf.mxu0
        %v2046 = vadd.f32 0.0, %v2045
        %2047 = vdwg.mxu0
        %v2048 = vld [vmem:[%s10 + $0x180] sm:$0xff]
        %v2049 = vld [vmem:[%s10 + $0x188] sm:$0xff]
        %v2050 = vld [vmem:[%s10 + $0x190] sm:$0xff]
        %v2051 = vld [vmem:[%s10 + $0x198] sm:$0xff]
        %v2052 = vld [vmem:[%s10 + $0x1a0] sm:$0xff]
        %v2053 = vld [vmem:[%s10 + $0x1a8] sm:$0xff]
        %v2054 = vld [vmem:[%s10 + $0x1b0] sm:$0xff]
        %v2055 = vld [vmem:[%s10 + $0x1b8] sm:$0xff]
        %2057 = vrot.lane.b32.xlu0 %v1841, 127
        %v2058 = vpop.permute.xlu0 %2057
        %v2059 = vsel %vm1860, %v2058, 0
        %2061 = vmatpush.msra.mxu0 0.0
        %2062 = vmatpush.msra.mxu0 0.0
        %2063 = vmatpush.msra.mxu0 0.0
        %2064 = vmatpush.msra.mxu0 0.0
        %2065 = vmatpush.msra.mxu0 0.0
        %2066 = vmatpush.msra.mxu0 0.0
        %2067 = vmatpush.msra.mxu0 0.0
        %2068 = vmatpush.msra.mxu0 0.0
        %2069 = vmatpush.msra.mxu0 0.0
        %2070 = vmatpush.msra.mxu0 0.0
        %2071 = vmatpush.msra.mxu0 0.0
        %2072 = vmatpush.msra.mxu0 0.0
        %2073 = vmatpush.msra.mxu0 %v2055
        %2074 = vmatpush.msra.mxu0 %v2054
        %2075 = vmatpush.msra.mxu0 %v2053
        %2076 = vmatpush.msra.mxu0 %v2052
        %2077 = vmatmul.f32.gmra.mxu0 %v2059
        %v2078 = vpop.f32.mrf.mxu0
        %v2079 = vadd.f32 0.0, %v2078
        %2080 = vdwg.mxu0
        %v2081 = vld [vmem:[%s10 + $0x1c0] sm:$0xff]
        %v2082 = vld [vmem:[%s10 + $0x1c8] sm:$0xff]
        %v2083 = vld [vmem:[%s10 + $0x1d0] sm:$0xff]
        %v2084 = vld [vmem:[%s10 + $0x1d8] sm:$0xff]
        %v2085 = vld [vmem:[%s10 + $0x1e0] sm:$0xff]
        %v2086 = vld [vmem:[%s10 + $0x1e8] sm:$0xff]
        %v2087 = vld [vmem:[%s10 + $0x1f0] sm:$0xff]
        %v2088 = vld [vmem:[%s10 + $0x1f8] sm:$0xff]
        %2090 = vrot.lane.b32.xlu0 %v1847, 127
        %v2091 = vpop.permute.xlu0 %2090
        %v2092 = vsel %vm1860, %v2091, 0
        %2094 = vmatpush.msra.mxu0 0.0
        %2095 = vmatpush.msra.mxu0 0.0
        %2096 = vmatpush.msra.mxu0 0.0
        %2097 = vmatpush.msra.mxu0 0.0
        %2098 = vmatpush.msra.mxu0 0.0
        %2099 = vmatpush.msra.mxu0 0.0
        %2100 = vmatpush.msra.mxu0 0.0
        %2101 = vmatpush.msra.mxu0 0.0
        %2102 = vmatpush.msra.mxu0 0.0
        %2103 = vmatpush.msra.mxu0 0.0
        %2104 = vmatpush.msra.mxu0 0.0
        %2105 = vmatpush.msra.mxu0 0.0
        %2106 = vmatpush.msra.mxu0 %v2088
        %2107 = vmatpush.msra.mxu0 %v2087
        %2108 = vmatpush.msra.mxu0 %v2086
        %2109 = vmatpush.msra.mxu0 %v2085
        %2110 = vmatmul.f32.gmra.mxu0 %v2092
        %v2111 = vpop.f32.mrf.mxu0
        %v2112 = vadd.f32 0.0, %v2111
        %2113 = vdwg.mxu0
        %2115 = vrot.lane.b32.xlu0 %v1802, 127
        %v2116 = vpop.permute.xlu0 %2115
        %v2117 = vsel %vm1860, %v2116, 0
        %2119 = vmatpush.msra.mxu0 0.0
        %2120 = vmatpush.msra.mxu0 0.0
        %2121 = vmatpush.msra.mxu0 0.0
        %2122 = vmatpush.msra.mxu0 0.0
        %2123 = vmatpush.msra.mxu0 0.0
        %2124 = vmatpush.msra.mxu0 0.0
        %2125 = vmatpush.msra.mxu0 0.0
        %2126 = vmatpush.msra.mxu0 0.0
        %2127 = vmatpush.msra.mxu0 0.0
        %2128 = vmatpush.msra.mxu0 0.0
        %2129 = vmatpush.msra.mxu0 0.0
        %2130 = vmatpush.msra.mxu0 0.0
        %2131 = vmatpush.msra.mxu0 %v1852
        %2132 = vmatpush.msra.mxu0 %v1851
        %2133 = vmatpush.msra.mxu0 %v1850
        %2134 = vmatpush.msra.mxu0 %v1849
        %2135 = vmatmul.f32.gmra.mxu0 %v2117
        %v2136 = vpop.f32.mrf.mxu0
        %v2137 = vadd.f32 %v1881, %v2136
        %2138 = vdwg.mxu0
        %2140 = vrot.lane.b32.xlu0 %v1808, 127
        %v2141 = vpop.permute.xlu0 %2140
        %v2142 = vsel %vm1860, %v2141, 0
        %2144 = vmatpush.msra.mxu0 0.0
        %2145 = vmatpush.msra.mxu0 0.0
        %2146 = vmatpush.msra.mxu0 0.0
        %2147 = vmatpush.msra.mxu0 0.0
        %2148 = vmatpush.msra.mxu0 0.0
        %2149 = vmatpush.msra.mxu0 0.0
        %2150 = vmatpush.msra.mxu0 0.0
        %2151 = vmatpush.msra.mxu0 0.0
        %2152 = vmatpush.msra.mxu0 0.0
        %2153 = vmatpush.msra.mxu0 0.0
        %2154 = vmatpush.msra.mxu0 0.0
        %2155 = vmatpush.msra.mxu0 0.0
        %2156 = vmatpush.msra.mxu0 %v1886
        %2157 = vmatpush.msra.mxu0 %v1885
        %2158 = vmatpush.msra.mxu0 %v1884
        %2159 = vmatpush.msra.mxu0 %v1883
        %2160 = vmatmul.f32.gmra.mxu0 %v2142
        %v2161 = vpop.f32.mrf.mxu0
        %v2162 = vadd.f32 %v1914, %v2161
        %2163 = vdwg.mxu0
        %2165 = vrot.lane.b32.xlu0 %v1814, 127
        %v2166 = vpop.permute.xlu0 %2165
        %v2167 = vsel %vm1860, %v2166, 0
        %2169 = vmatpush.msra.mxu0 0.0
        %2170 = vmatpush.msra.mxu0 0.0
        %2171 = vmatpush.msra.mxu0 0.0
        %2172 = vmatpush.msra.mxu0 0.0
        %2173 = vmatpush.msra.mxu0 0.0
        %2174 = vmatpush.msra.mxu0 0.0
        %2175 = vmatpush.msra.mxu0 0.0
        %2176 = vmatpush.msra.mxu0 0.0
        %2177 = vmatpush.msra.mxu0 0.0
        %2178 = vmatpush.msra.mxu0 0.0
        %2179 = vmatpush.msra.mxu0 0.0
        %2180 = vmatpush.msra.mxu0 0.0
        %2181 = vmatpush.msra.mxu0 %v1919
        %2182 = vmatpush.msra.mxu0 %v1918
        %2183 = vmatpush.msra.mxu0 %v1917
        %2184 = vmatpush.msra.mxu0 %v1916
        %2185 = vmatmul.f32.gmra.mxu0 %v2167
        %v2186 = vpop.f32.mrf.mxu0
        %v2187 = vadd.f32 %v1947, %v2186
        %2188 = vdwg.mxu0
        %2190 = vrot.lane.b32.xlu0 %v1820, 127
        %v2191 = vpop.permute.xlu0 %2190
        %v2192 = vsel %vm1860, %v2191, 0
        %2194 = vmatpush.msra.mxu0 0.0
        %2195 = vmatpush.msra.mxu0 0.0
        %2196 = vmatpush.msra.mxu0 0.0
        %2197 = vmatpush.msra.mxu0 0.0
        %2198 = vmatpush.msra.mxu0 0.0
        %2199 = vmatpush.msra.mxu0 0.0
        %2200 = vmatpush.msra.mxu0 0.0
        %2201 = vmatpush.msra.mxu0 0.0
        %2202 = vmatpush.msra.mxu0 0.0
        %2203 = vmatpush.msra.mxu0 0.0
        %2204 = vmatpush.msra.mxu0 0.0
        %2205 = vmatpush.msra.mxu0 0.0
        %2206 = vmatpush.msra.mxu0 %v1952
        %2207 = vmatpush.msra.mxu0 %v1951
        %2208 = vmatpush.msra.mxu0 %v1950
        %2209 = vmatpush.msra.mxu0 %v1949
        %2210 = vmatmul.f32.gmra.mxu0 %v2192
        %v2211 = vpop.f32.mrf.mxu0
        %v2212 = vadd.f32 %v1980, %v2211
        %2213 = vdwg.mxu0
        %2215 = vrot.lane.b32.xlu0 %v1826, 127
        %v2216 = vpop.permute.xlu0 %2215
        %v2217 = vsel %vm1860, %v2216, 0
        %2219 = vmatpush.msra.mxu0 0.0
        %2220 = vmatpush.msra.mxu0 0.0
        %2221 = vmatpush.msra.mxu0 0.0
        %2222 = vmatpush.msra.mxu0 0.0
        %2223 = vmatpush.msra.mxu0 0.0
        %2224 = vmatpush.msra.mxu0 0.0
        %2225 = vmatpush.msra.mxu0 0.0
        %2226 = vmatpush.msra.mxu0 0.0
        %2227 = vmatpush.msra.mxu0 0.0
        %2228 = vmatpush.msra.mxu0 0.0
        %2229 = vmatpush.msra.mxu0 0.0
        %2230 = vmatpush.msra.mxu0 0.0
        %2231 = vmatpush.msra.mxu0 %v1985
        %2232 = vmatpush.msra.mxu0 %v1984
        %2233 = vmatpush.msra.mxu0 %v1983
        %2234 = vmatpush.msra.mxu0 %v1982
        %2235 = vmatmul.f32.gmra.mxu0 %v2217
        %v2236 = vpop.f32.mrf.mxu0
        %v2237 = vadd.f32 %v2013, %v2236
        %2238 = vdwg.mxu0
        %2240 = vrot.lane.b32.xlu0 %v1832, 127
        %v2241 = vpop.permute.xlu0 %2240
        %v2242 = vsel %vm1860, %v2241, 0
        %2244 = vmatpush.msra.mxu0 0.0
        %2245 = vmatpush.msra.mxu0 0.0
        %2246 = vmatpush.msra.mxu0 0.0
        %2247 = vmatpush.msra.mxu0 0.0
        %2248 = vmatpush.msra.mxu0 0.0
        %2249 = vmatpush.msra.mxu0 0.0
        %2250 = vmatpush.msra.mxu0 0.0
        %2251 = vmatpush.msra.mxu0 0.0
        %2252 = vmatpush.msra.mxu0 0.0
        %2253 = vmatpush.msra.mxu0 0.0
        %2254 = vmatpush.msra.mxu0 0.0
        %2255 = vmatpush.msra.mxu0 0.0
        %2256 = vmatpush.msra.mxu0 %v2018
        %2257 = vmatpush.msra.mxu0 %v2017
        %2258 = vmatpush.msra.mxu0 %v2016
        %2259 = vmatpush.msra.mxu0 %v2015
        %2260 = vmatmul.f32.gmra.mxu0 %v2242
        %v2261 = vpop.f32.mrf.mxu0
        %v2262 = vadd.f32 %v2046, %v2261
        %2263 = vdwg.mxu0
        %2265 = vrot.lane.b32.xlu0 %v1838, 127
        %v2266 = vpop.permute.xlu0 %2265
        %v2267 = vsel %vm1860, %v2266, 0
        %2269 = vmatpush.msra.mxu0 0.0
        %2270 = vmatpush.msra.mxu0 0.0
        %2271 = vmatpush.msra.mxu0 0.0
        %2272 = vmatpush.msra.mxu0 0.0
        %2273 = vmatpush.msra.mxu0 0.0
        %2274 = vmatpush.msra.mxu0 0.0
        %2275 = vmatpush.msra.mxu0 0.0
        %2276 = vmatpush.msra.mxu0 0.0
        %2277 = vmatpush.msra.mxu0 0.0
        %2278 = vmatpush.msra.mxu0 0.0
        %2279 = vmatpush.msra.mxu0 0.0
        %2280 = vmatpush.msra.mxu0 0.0
        %2281 = vmatpush.msra.mxu0 %v2051
        %2282 = vmatpush.msra.mxu0 %v2050
        %2283 = vmatpush.msra.mxu0 %v2049
        %2284 = vmatpush.msra.mxu0 %v2048
        %2285 = vmatmul.f32.gmra.mxu0 %v2267
        %v2286 = vpop.f32.mrf.mxu0
        %v2287 = vadd.f32 %v2079, %v2286
        %2288 = vdwg.mxu0
        %2290 = vrot.lane.b32.xlu0 %v1844, 127
        %v2291 = vpop.permute.xlu0 %2290
        %v2292 = vsel %vm1860, %v2291, 0
        %2294 = vmatpush.msra.mxu0 0.0
        %2295 = vmatpush.msra.mxu0 0.0
        %2296 = vmatpush.msra.mxu0 0.0
        %2297 = vmatpush.msra.mxu0 0.0
        %2298 = vmatpush.msra.mxu0 0.0
        %2299 = vmatpush.msra.mxu0 0.0
        %2300 = vmatpush.msra.mxu0 0.0
        %2301 = vmatpush.msra.mxu0 0.0
        %2302 = vmatpush.msra.mxu0 0.0
        %2303 = vmatpush.msra.mxu0 0.0
        %2304 = vmatpush.msra.mxu0 0.0
        %2305 = vmatpush.msra.mxu0 0.0
        %2306 = vmatpush.msra.mxu0 %v2084
        %2307 = vmatpush.msra.mxu0 %v2083
        %2308 = vmatpush.msra.mxu0 %v2082
        %2309 = vmatpush.msra.mxu0 %v2081
        %2310 = vmatmul.f32.gmra.mxu0 %v2292
        %v2311 = vpop.f32.mrf.mxu0
        %v2312 = vadd.f32 %v2112, %v2311
        %2313 = vdwg.mxu0
        %v2314 = vadd.f32 %v2137, %v2162
        %v2315 = vadd.f32 %v2187, %v2212
        %v2316 = vadd.f32 %v2237, %v2262
        %v2317 = vadd.f32 %v2287, %v2312
        %v2318 = vadd.f32 %v2314, %v2315
        %v2319 = vadd.f32 %v2316, %v2317
        %v2320 = vadd.f32 %v2318, %v2319
        %v2321 = vld [vmem:[%s11] sm:$0x1]
        %v2323 = vperm.slane %v2321, 0
        %v2325 = vadd.f32 %v2320, %v2323
        %v2326 = vmax.f32 %v2325, 0.0
        %v2327 = vld [vmem:[%s12] sm:$0xff]
        %v2328 = vld [vmem:[%s12 + $0x8] sm:$0xff]
        %v2329 = vld [vmem:[%s12 + $0x10] sm:$0xff]
        %v2330 = vld [vmem:[%s12 + $0x18] sm:$0xff]
        %v2331 = vld [vmem:[%s12 + $0x20] sm:$0xff]
        %v2332 = vld [vmem:[%s12 + $0x28] sm:$0xff]
        %v2333 = vld [vmem:[%s12 + $0x30] sm:$0xff]
        %v2334 = vld [vmem:[%s12 + $0x38] sm:$0xff]
        %v2335 = vld [vmem:[%s13] sm:$0x1]
        %v2337 = vperm.slane %v2335, 0
        %v2340 = vsel %vm1449, %v2326, 0
        %2342 = vmatpush.msra.mxu0 0.0
        %2343 = vmatpush.msra.mxu0 0.0
        %2344 = vmatpush.msra.mxu0 0.0
        %2345 = vmatpush.msra.mxu0 0.0
        %2346 = vmatpush.msra.mxu0 0.0
        %2347 = vmatpush.msra.mxu0 0.0
        %2348 = vmatpush.msra.mxu0 0.0
        %2349 = vmatpush.msra.mxu0 0.0
        %2350 = vmatpush.msra.mxu0 %v2334
        %2351 = vmatpush.msra.mxu0 %v2333
        %2352 = vmatpush.msra.mxu0 %v2332
        %2353 = vmatpush.msra.mxu0 %v2331
        %2354 = vmatpush.msra.mxu0 %v2330
        %2355 = vmatpush.msra.mxu0 %v2329
        %2356 = vmatpush.msra.mxu0 %v2328
        %2357 = vmatpush.msra.mxu0 %v2327
        %2358 = vmatmul.f32.gmra.mxu0 %v2340
        %v2359 = vpop.f32.mrf.mxu0
        %v2360 = vadd.f32 %v2337, %v2359
        %2361 = vdwg.mxu0
        %v2362 = vmax.f32 %v2360, 0.0
        %v2363 = vld [vmem:[%s14] sm:$0xff]
        %v2364 = vld [vmem:[%s14 + $0x8] sm:$0xff]
        %v2365 = vld [vmem:[%s14 + $0x10] sm:$0xff]
        %v2366 = vld [vmem:[%s14 + $0x18] sm:$0xff]
        %v2367 = vld [vmem:[%s15] sm:$0x1]
        %v2369 = vperm.slane %v2367, 0
        %v2372 = vsel %vm1860, %v2362, 0
        %2374 = vmatpush.msra.mxu0 0.0
        %2375 = vmatpush.msra.mxu0 0.0
        %2376 = vmatpush.msra.mxu0 0.0
        %2377 = vmatpush.msra.mxu0 0.0
        %2378 = vmatpush.msra.mxu0 0.0
        %2379 = vmatpush.msra.mxu0 0.0
        %2380 = vmatpush.msra.mxu0 0.0
        %2381 = vmatpush.msra.mxu0 0.0
        %2382 = vmatpush.msra.mxu0 0.0
        %2383 = vmatpush.msra.mxu0 0.0
        %2384 = vmatpush.msra.mxu0 0.0
        %2385 = vmatpush.msra.mxu0 0.0
        %2386 = vmatpush.msra.mxu0 %v2366
        %2387 = vmatpush.msra.mxu0 %v2365
        %2388 = vmatpush.msra.mxu0 %v2364
        %2389 = vmatpush.msra.mxu0 %v2363
        %2390 = vmatmul.f32.gmra.mxu0 %v2372
        %v2391 = vpop.f32.mrf.mxu0
        %v2392 = vadd.f32 %v2369, %v2391
        %2393 = vdwg.mxu0
        %2394 = vst [vmem:[%s549] sm:$0xff] %v2392
        %s2395 = sand.u32 %s379, 1
        %s2396 = scalar_lea.sflag [#allocation4], %s2395
        %s2397 = sand.u32 %s379, 1
        %s2398 = smul.addr %s2397, 8
        %s2399 = scalar_lea.vmem [#allocation3], %s2398
        // Predicated region
        $region108: #{fused_forward.1} parent=102 // pred_check
          %p2400 = pneg %p389
        $region109: #{fused_forward.1} parent=102 // pred_check_branch
          %2402 = sbr.rel (%p2400) target = $region111
        $region110: #{fused_forward.1} parent=102 // pred_region
          %2404 = vsyncadd %s2396, 0
          %s2405 = smul.addr %s30, 8
          %s2406 = scalar_lea.hbm %s16, %s2405
          %s2408 = sshll.u32 %s2399, 4
          %s2409 = int_to_ptr.vmem [resolvable:$true] %s2408
          %s2410 = sshll.u32 %s2406, 4
          %s2411 = int_to_ptr.hbm [resolvable:$true] %s2410
          %2413 = dma.vmem_to_hbm [thread:$0]  %s2409, 128, %s2411, %s2396
        $region111: #{fused_forward.1} parent=102 // pred_fallthru
          _
      $region103: #{fused_forward.1} parent=5 // pred_fallthru
        _
      %p2414 = scmp.le.s32.totalorder 2, %s25
      // Predicated region
      $region112: #{fused_forward.1} parent=5 // pred_check
        %p2415 = pneg %p2414
      $region113: #{fused_forward.1} parent=5 // pred_check_branch
        %2417 = sbr.rel (%p2415) target = $region115
      $region114: #{fused_forward.1} parent=5 // pred_region
        %s2418 = ssub.s32 %s25, 2
        // Predicated region
        $region116: #{fused_forward.1} parent=114 // pred_check
          %p2419 = pneg %p395
        $region117: #{fused_forward.1} parent=114 // pred_check_branch
          %2421 = sbr.rel (%p2419) target = $region119
        $region118: #{fused_forward.1} parent=114 // pred_region
          %s2422 = sand.u32 %s380, 1
          %s2423 = scalar_lea.sflag [#allocation4], %s2422
          %s2424 = sand.u32 %s380, 1
          %s2425 = smul.addr %s2424, 8
          %s2426 = scalar_lea.vmem [#allocation3], %s2425
          %2428 = dma.done %s2423, 128
        $region119: #{fused_forward.1} parent=114 // pred_fallthru
          _
      $region115: #{fused_forward.1} parent=5 // pred_fallthru
        _
    $region6: #{fused_forward.1} parent=1 // loop_footer
      %s29 = sadd.s32 1, %s25
    $region7: #{fused_forward.1} parent=1 // loop_footer_branch
      %24 = sbr.rel target = $region3
    $region8: #{fused_forward.1} parent=1 // loop_exit
      _
    %2429 = vsyncpa [#allocation4], 1
    %s2430 = scalar_lea.sflag [#allocation4], 1
    %2431 = vsyncpa %s2430, 1

</llo_original>
